<compile_context>
chip_gen: v5e
topology: v5e:2x2
jax: 0.10.0
libtpu: 0.0.40
codegen_flags: <defaults>
</compile_context>

<pallas_src>
import math

import jax
import jax.numpy as jnp
from jax import lax
from jax.experimental import pallas as pl
from jax.experimental.pallas import tpu as pltpu


def sentiment_gru_kernel(emb_ref,                    # (T, B, E) time-major
                         ln_w_ref, ln_b_ref,         # (1, E)
                         wih0_t_ref, bih0_ref,       # (E, 3H), (1, 3H)
                         whh_blk_ref, bhh_ref,       # (2H, 6H), (1, 6H)
                         wih1_t_ref, bih1_ref,       # (H, 3H), (1, 3H)
                         fc_w_ref, fc_b_ref,         # (1, H), (1, 1)
                         out_ref,                    # (B, 1)
                         gi0_scr):                   # VMEM scratch (T, B, 3H)
    T, B, E = emb_ref.shape
    H3 = wih0_t_ref.shape[1]
    H = H3 // 3

    # ---- Hoisted preamble: LayerNorm + layer-0 input projection over the slab.
    x = emb_ref[...].reshape(T * B, E)
    mean = jnp.mean(x, axis=-1, keepdims=True)
    var = jnp.mean((x - mean) ** 2, axis=-1, keepdims=True)
    x = (x - mean) * lax.rsqrt(var + 1e-5) * ln_w_ref[...] + ln_b_ref[...]
    gi0 = jnp.dot(x, wih0_t_ref[...],
                  preferred_element_type=jnp.float32) + bih0_ref[...]
    gi0_scr[...] = gi0.reshape(T, B, H3)             # per-step input gates

    # Loop-invariant weights loaded once (already transposed/fused in wrapper).
    whh_blk = whh_blk_ref[...]
    bhh = bhh_ref[...]
    wih1_t = wih1_t_ref[...]
    bih1 = bih1_ref[...]

    def gates(gi, gh):
        # PyTorch GRU gate order [r, z, n]; single sigmoid on the fused [r,z].
        rz = jax.nn.sigmoid(gi[:, :2 * H] + gh[:, :2 * H])
        r, z = rz[:, :H], rz[:, H:]
        n = jnp.tanh(gi[:, 2 * H:] + r * gh[:, 2 * H:])
        return n, z

    def step(t, carry):
        h0, h1 = carry
        # Fused hidden-to-hidden projection for BOTH layers (block-diag weight):
        # [h0, h1] @ blockdiag(whh0^T, whh1^T) -> [gh0 | gh1].
        hcat = jnp.concatenate([h0, h1], axis=1)                     # (B, 2H)
        ghh = jnp.dot(hcat, whh_blk,
                      preferred_element_type=jnp.float32) + bhh      # (B, 6H)
        gh0, gh1 = ghh[:, :H3], ghh[:, H3:]

        # Layer 0 (input gates precomputed outside the loop).
        n0, z0 = gates(gi0_scr[t], gh0)
        h0_new = n0 + z0 * (h0 - n0)

        # Layer 1: input projection of the fresh h0.
        gi1 = jnp.dot(h0_new, wih1_t,
                      preferred_element_type=jnp.float32) + bih1     # (B, 3H)
        n1, z1 = gates(gi1, gh1)
        h1_new = n1 + z1 * (h1 - n1)
        return (h0_new, h1_new)

    h0 = jnp.zeros((B, H), jnp.float32)
    h1 = jnp.zeros((B, H), jnp.float32)
    h0, h1 = lax.fori_loop(0, T, step, (h0, h1), unroll=True)

    # FC head as a VPU lane reduction (avoids an MXU pop into a 1-lane result).
    logits = jnp.sum(h1 * fc_w_ref[...], axis=-1, keepdims=True) + fc_b_ref[...]
    out_ref[...] = jax.nn.sigmoid(logits)


def sentiment_gru_forward(x_ids, params):
    """x_ids: (B, T) int32 token ids. Returns (B, 1) float32 probabilities."""
    emb_table = params["embedding"]
    B, T = x_ids.shape
    E = emb_table.shape[1]
    H = params["whh0"].shape[1]
    H3 = 3 * H

    # Glue: embedding gather, presented time-major.  XLA fuses the gather and
    # the transpose into a single output pass (no extra HBM round trip).
    embedded = jnp.take(emb_table, x_ids, axis=0)          # (B, T, E)
    embedded = jnp.transpose(embedded, (1, 0, 2))          # (T, B, E)

    def r2(v):   # promote 1-D params to (1, N) for TPU-friendly layout
        return v.reshape(1, -1)

    # Wrapper-side layout plumbing: pre-transposed / pre-fused weights so the
    # kernel never transposes inside the recurrent loop.
    wih0_t = params["wih0"].T.astype(jnp.float32)          # (E, 3H)
    wih1_t = params["wih1"].T.astype(jnp.float32)          # (H, 3H)
    whh0_t = params["whh0"].T.astype(jnp.float32)          # (H, 3H)
    whh1_t = params["whh1"].T.astype(jnp.float32)          # (H, 3H)
    zeros = jnp.zeros((H, H3), jnp.float32)
    whh_blk = jnp.concatenate(                             # (2H, 6H) block-diag
        [jnp.concatenate([whh0_t, zeros], axis=1),
         jnp.concatenate([zeros, whh1_t], axis=1)], axis=0)
    bhh_cat = jnp.concatenate(
        [params["bhh0"], params["bhh1"]]).reshape(1, -1)   # (1, 6H)

    args = (
        embedded,
        r2(params["ln_w"]), r2(params["ln_b"]),
        wih0_t, r2(params["bih0"]),
        whh_blk, bhh_cat,
        wih1_t, r2(params["bih1"]),
        params["fc_w"], r2(params["fc_b"]),
    )

    vmem = pl.BlockSpec(memory_space=pltpu.MemorySpace.VMEM)
    return pl.pallas_call(
        sentiment_gru_kernel,
        out_shape=jax.ShapeDtypeStruct((B, 1), jnp.float32),
        in_specs=[vmem] * len(args),
        out_specs=vmem,
        scratch_shapes=[pltpu.VMEM((T, B, H3), jnp.float32)],
    )(*args)


def reference_forward(x_ids, params):
    """Pure-JAX reference mirroring PyTorch semantics (for validation)."""
    emb = jnp.take(params["embedding"], x_ids, axis=0)  # (B, T, E)
    mean = jnp.mean(emb, axis=-1, keepdims=True)
    var = jnp.mean((emb - mean) ** 2, axis=-1, keepdims=True)
    emb = (emb - mean) / jnp.sqrt(var + 1e-5) * params["ln_w"] + params["ln_b"]

    B, T, E = emb.shape
    H = params["whh0"].shape[1]

    def cell(x, h, wih, whh, bih, bhh):
        gi = x @ wih.T + bih
        gh = h @ whh.T + bhh
        r = jax.nn.sigmoid(gi[:, :H] + gh[:, :H])
        z = jax.nn.sigmoid(gi[:, H:2 * H] + gh[:, H:2 * H])
        n = jnp.tanh(gi[:, 2 * H:] + r * gh[:, 2 * H:])
        return (1.0 - z) * n + z * h

    h0 = jnp.zeros((B, H), jnp.float32)
    h1 = jnp.zeros((B, H), jnp.float32)
    for t in range(T):
        h0 = cell(emb[:, t], h0, params["wih0"], params["whh0"],
                  params["bih0"], params["bhh0"])
        h1 = cell(h0, h1, params["wih1"], params["whh1"],
                  params["bih1"], params["bhh1"])
    return jax.nn.sigmoid(h1 @ params["fc_w"].T + params["fc_b"])


def make_params(key, vocab_size, embedding_dim, hidden_dim, output_dim):
    ks = jax.random.split(key, 12)
    H, E = hidden_dim, embedding_dim
    k = 1.0 / math.sqrt(H)

    def u(kk, shape):
        return jax.random.uniform(kk, shape, jnp.float32, minval=-k, maxval=k)

    return {
        "embedding": jax.random.normal(ks[0], (vocab_size, E), jnp.float32),
        "ln_w": jnp.ones((E,), jnp.float32),
        "ln_b": jnp.zeros((E,), jnp.float32),
        "wih0": u(ks[1], (3 * H, E)),
        "whh0": u(ks[2], (3 * H, H)),
        "bih0": u(ks[3], (3 * H,)),
        "bhh0": u(ks[4], (3 * H,)),
        "wih1": u(ks[5], (3 * H, H)),
        "whh1": u(ks[6], (3 * H, H)),
        "bih1": u(ks[7], (3 * H,)),
        "bhh1": u(ks[8], (3 * H,)),
        "fc_w": u(ks[9], (output_dim, H)),
        "fc_b": u(ks[10], (output_dim,)),
    }


if __name__ == "__main__":
    # Small, module-consistent shapes
    batch, seq_len = 2, 8
    vocab_size, embedding_dim, hidden_dim, output_dim = 50, 32, 32, 1

    root = jax.random.PRNGKey(0)
    k_par, k_ids = jax.random.split(root)
    params = make_params(k_par, vocab_size, embedding_dim, hidden_dim, output_dim)
    x_ids = jax.random.randint(k_ids, (batch, seq_len), 0, vocab_size, jnp.int32)

    out = sentiment_gru_forward(x_ids, params)
    out = jax.block_until_ready(out)

    ref = reference_forward(x_ids, params)
    assert out.shape == (batch, output_dim)
    assert jnp.allclose(out, ref, rtol=1e-4, atol=1e-5), (out, ref)

    print("KERNEL_OK")
</pallas_src>

<mosaic_0001>
module attributes {stable_mosaic.version = 11 : i64} {
  func.func @sentiment_gru_kernel(%arg0: memref<8x2x32xf32, #tpu.memory_space<vmem>>, %arg1: memref<1x32xf32, #tpu.memory_space<vmem>>, %arg2: memref<1x32xf32, #tpu.memory_space<vmem>>, %arg3: memref<32x96xf32, #tpu.memory_space<vmem>>, %arg4: memref<1x96xf32, #tpu.memory_space<vmem>>, %arg5: memref<64x192xf32, #tpu.memory_space<vmem>>, %arg6: memref<1x192xf32, #tpu.memory_space<vmem>>, %arg7: memref<32x96xf32, #tpu.memory_space<vmem>>, %arg8: memref<1x96xf32, #tpu.memory_space<vmem>>, %arg9: memref<1x32xf32, #tpu.memory_space<vmem>>, %arg10: memref<1x1xf32, #tpu.memory_space<vmem>>, %arg11: memref<2x1xf32, #tpu.memory_space<vmem>>, %arg12: memref<8x2x96xf32, #tpu.memory_space<vmem>>) attributes {dimension_semantics = [], scalar_prefetch = 0 : i64, scratch_operands = 1 : i64, tpu.core_type = #tpu.core_type<tc>} {
    %c0 = arith.constant 0 : index
    %c0_0 = arith.constant 0 : index
    %c0_1 = arith.constant 0 : index
    %0 = vector.load %arg0[%c0, %c0_0, %c0_1] : memref<8x2x32xf32, #tpu.memory_space<vmem>>, vector<8x2x32xf32>
    %1 = vector.shape_cast %0 : vector<8x2x32xf32> to vector<16x32xf32>
    %cst = arith.constant dense<0.000000e+00> : vector<16xf32>
    %2 = vector.multi_reduction <add>, %1, %cst [1] : vector<16x32xf32> to vector<16xf32>
    %3 = vector.shape_cast %2 : vector<16xf32> to vector<16x1xf32>
    %cst_2 = arith.constant 3.200000e+01 : f32
    %4 = vector.broadcast %cst_2 : f32 to vector<16x1xf32>
    %5 = arith.divf %3, %4 : vector<16x1xf32>
    %6 = vector.broadcast %5 : vector<16x1xf32> to vector<16x32xf32>
    %7 = arith.subf %1, %6 : vector<16x32xf32>
    %8 = arith.mulf %7, %7 : vector<16x32xf32>
    %cst_3 = arith.constant dense<0.000000e+00> : vector<16xf32>
    %9 = vector.multi_reduction <add>, %8, %cst_3 [1] : vector<16x32xf32> to vector<16xf32>
    %10 = vector.shape_cast %9 : vector<16xf32> to vector<16x1xf32>
    %cst_4 = arith.constant 3.200000e+01 : f32
    %11 = vector.broadcast %cst_4 : f32 to vector<16x1xf32>
    %12 = arith.divf %10, %11 : vector<16x1xf32>
    %13 = vector.broadcast %5 : vector<16x1xf32> to vector<16x32xf32>
    %14 = arith.subf %1, %13 : vector<16x32xf32>
    %cst_5 = arith.constant 9.99999974E-6 : f32
    %15 = vector.broadcast %cst_5 : f32 to vector<16x1xf32>
    %16 = arith.addf %12, %15 : vector<16x1xf32>
    %17 = math.rsqrt %16 : vector<16x1xf32>
    %18 = vector.broadcast %17 : vector<16x1xf32> to vector<16x32xf32>
    %19 = arith.mulf %14, %18 : vector<16x32xf32>
    %c0_6 = arith.constant 0 : index
    %c0_7 = arith.constant 0 : index
    %20 = vector.load %arg1[%c0_6, %c0_7] : memref<1x32xf32, #tpu.memory_space<vmem>>, vector<1x32xf32>
    %21 = vector.broadcast %20 : vector<1x32xf32> to vector<16x32xf32>
    %22 = arith.mulf %19, %21 : vector<16x32xf32>
    %c0_8 = arith.constant 0 : index
    %c0_9 = arith.constant 0 : index
    %23 = vector.load %arg2[%c0_8, %c0_9] : memref<1x32xf32, #tpu.memory_space<vmem>>, vector<1x32xf32>
    %24 = vector.broadcast %23 : vector<1x32xf32> to vector<16x32xf32>
    %25 = arith.addf %22, %24 : vector<16x32xf32>
    %c0_10 = arith.constant 0 : index
    %c0_11 = arith.constant 0 : index
    %26 = vector.load %arg3[%c0_10, %c0_11] : memref<32x96xf32, #tpu.memory_space<vmem>>, vector<32x96xf32>
    %cst_12 = arith.constant dense<0.000000e+00> : vector<16x96xf32>
    %27 = tpu.matmul %25, %26, %cst_12 {dimension_numbers = #tpu.dot_dimension_numbers<[1], [0], [0], [1], [0, 0, 1, 1], [], []>} : vector<16x32xf32>, vector<32x96xf32>, vector<16x96xf32> -> vector<16x96xf32>
    %c0_13 = arith.constant 0 : index
    %c0_14 = arith.constant 0 : index
    %28 = vector.load %arg4[%c0_13, %c0_14] : memref<1x96xf32, #tpu.memory_space<vmem>>, vector<1x96xf32>
    %29 = vector.broadcast %28 : vector<1x96xf32> to vector<16x96xf32>
    %30 = arith.addf %27, %29 : vector<16x96xf32>
    %31 = vector.shape_cast %30 : vector<16x96xf32> to vector<8x2x96xf32>
    %c0_15 = arith.constant 0 : index
    %c0_16 = arith.constant 0 : index
    %c0_17 = arith.constant 0 : index
    %32 = vector.load %arg12[%c0_15, %c0_16, %c0_17] : memref<8x2x96xf32, #tpu.memory_space<vmem>>, vector<8x2x96xf32>
    tpu.vector_store %arg12[%c0_15, %c0_16, %c0_17], %31 {strides = array<i32>} : memref<8x2x96xf32, #tpu.memory_space<vmem>>, vector<8x2x96xf32>,
    %c0_18 = arith.constant 0 : index
    %c0_19 = arith.constant 0 : index
    %33 = vector.load %arg5[%c0_18, %c0_19] : memref<64x192xf32, #tpu.memory_space<vmem>>, vector<64x192xf32>
    %c0_20 = arith.constant 0 : index
    %c0_21 = arith.constant 0 : index
    %34 = vector.load %arg6[%c0_20, %c0_21] : memref<1x192xf32, #tpu.memory_space<vmem>>, vector<1x192xf32>
    %c0_22 = arith.constant 0 : index
    %c0_23 = arith.constant 0 : index
    %35 = vector.load %arg7[%c0_22, %c0_23] : memref<32x96xf32, #tpu.memory_space<vmem>>, vector<32x96xf32>
    %c0_24 = arith.constant 0 : index
    %c0_25 = arith.constant 0 : index
    %36 = vector.load %arg8[%c0_24, %c0_25] : memref<1x96xf32, #tpu.memory_space<vmem>>, vector<1x96xf32>
    %cst_26 = arith.constant 0.000000e+00 : f32
    %37 = vector.broadcast %cst_26 : f32 to vector<2x32xf32>
    %cst_27 = arith.constant 0.000000e+00 : f32
    %38 = vector.broadcast %cst_27 : f32 to vector<2x32xf32>
    %c0_i32 = arith.constant 0 : i32
    %39 = tpu.concatenate %37, %38 in 1 : vector<2x32xf32>, vector<2x32xf32> -> vector<2x64xf32>
    %cst_28 = arith.constant dense<0.000000e+00> : vector<2x192xf32>
    %40 = tpu.matmul %39, %33, %cst_28 {dimension_numbers = #tpu.dot_dimension_numbers<[1], [0], [0], [1], [0, 0, 1, 1], [], []>} : vector<2x64xf32>, vector<64x192xf32>, vector<2x192xf32> -> vector<2x192xf32>
    %41 = vector.broadcast %34 : vector<1x192xf32> to vector<2x192xf32>
    %42 = arith.addf %40, %41 : vector<2x192xf32>
    %43 = vector.extract_strided_slice %42 {offsets = [0, 0], sizes = [2, 96], strides = [1, 1]} : vector<2x192xf32> to vector<2x96xf32>
    %44 = vector.extract_strided_slice %42 {offsets = [0, 96], sizes = [2, 96], strides = [1, 1]} : vector<2x192xf32> to vector<2x96xf32>
    %45 = arith.index_cast %c0_i32 : i32 to index
    %c0_29 = arith.constant 0 : index
    %c0_30 = arith.constant 0 : index
    %46 = vector.load %arg12[%45, %c0_29, %c0_30] : memref<8x2x96xf32, #tpu.memory_space<vmem>>, vector<1x2x96xf32>
    %47 = vector.shape_cast %46 : vector<1x2x96xf32> to vector<2x96xf32>
    %48 = vector.extract_strided_slice %47 {offsets = [0, 0], sizes = [2, 64], strides = [1, 1]} : vector<2x96xf32> to vector<2x64xf32>
    %49 = vector.extract_strided_slice %43 {offsets = [0, 0], sizes = [2, 64], strides = [1, 1]} : vector<2x96xf32> to vector<2x64xf32>
    %50 = arith.addf %48, %49 : vector<2x64xf32>
    %51 = arith.negf %50 : vector<2x64xf32>
    %52 = math.exp %51 : vector<2x64xf32>
    %cst_31 = arith.constant 1.000000e+00 : f32
    %53 = vector.broadcast %cst_31 : f32 to vector<2x64xf32>
    %54 = arith.addf %53, %52 : vector<2x64xf32>
    %55 = arith.divf %53, %54 : vector<2x64xf32>
    %56 = vector.extract_strided_slice %55 {offsets = [0, 0], sizes = [2, 32], strides = [1, 1]} : vector<2x64xf32> to vector<2x32xf32>
    %57 = vector.extract_strided_slice %55 {offsets = [0, 32], sizes = [2, 32], strides = [1, 1]} : vector<2x64xf32> to vector<2x32xf32>
    %58 = vector.extract_strided_slice %47 {offsets = [0, 64], sizes = [2, 32], strides = [1, 1]} : vector<2x96xf32> to vector<2x32xf32>
    %59 = vector.extract_strided_slice %43 {offsets = [0, 64], sizes = [2, 32], strides = [1, 1]} : vector<2x96xf32> to vector<2x32xf32>
    %60 = arith.mulf %56, %59 : vector<2x32xf32>
    %61 = arith.addf %58, %60 : vector<2x32xf32>
    %62 = math.tanh %61 : vector<2x32xf32>
    %63 = arith.subf %37, %62 : vector<2x32xf32>
    %64 = arith.mulf %57, %63 : vector<2x32xf32>
    %65 = arith.addf %62, %64 : vector<2x32xf32>
    %cst_32 = arith.constant dense<0.000000e+00> : vector<2x96xf32>
    %66 = tpu.matmul %65, %35, %cst_32 {dimension_numbers = #tpu.dot_dimension_numbers<[1], [0], [0], [1], [0, 0, 1, 1], [], []>} : vector<2x32xf32>, vector<32x96xf32>, vector<2x96xf32> -> vector<2x96xf32>
    %67 = vector.broadcast %36 : vector<1x96xf32> to vector<2x96xf32>
    %68 = arith.addf %66, %67 : vector<2x96xf32>
    %69 = vector.extract_strided_slice %68 {offsets = [0, 0], sizes = [2, 64], strides = [1, 1]} : vector<2x96xf32> to vector<2x64xf32>
    %70 = vector.extract_strided_slice %44 {offsets = [0, 0], sizes = [2, 64], strides = [1, 1]} : vector<2x96xf32> to vector<2x64xf32>
    %71 = arith.addf %69, %70 : vector<2x64xf32>
    %72 = arith.negf %71 : vector<2x64xf32>
    %73 = math.exp %72 : vector<2x64xf32>
    %cst_33 = arith.constant 1.000000e+00 : f32
    %74 = vector.broadcast %cst_33 : f32 to vector<2x64xf32>
    %75 = arith.addf %74, %73 : vector<2x64xf32>
    %76 = arith.divf %74, %75 : vector<2x64xf32>
    %77 = vector.extract_strided_slice %76 {offsets = [0, 0], sizes = [2, 32], strides = [1, 1]} : vector<2x64xf32> to vector<2x32xf32>
    %78 = vector.extract_strided_slice %76 {offsets = [0, 32], sizes = [2, 32], strides = [1, 1]} : vector<2x64xf32> to vector<2x32xf32>
    %79 = vector.extract_strided_slice %68 {offsets = [0, 64], sizes = [2, 32], strides = [1, 1]} : vector<2x96xf32> to vector<2x32xf32>
    %80 = vector.extract_strided_slice %44 {offsets = [0, 64], sizes = [2, 32], strides = [1, 1]} : vector<2x96xf32> to vector<2x32xf32>
    %81 = arith.mulf %77, %80 : vector<2x32xf32>
    %82 = arith.addf %79, %81 : vector<2x32xf32>
    %83 = math.tanh %82 : vector<2x32xf32>
    %84 = arith.subf %38, %83 : vector<2x32xf32>
    %85 = arith.mulf %78, %84 : vector<2x32xf32>
    %86 = arith.addf %83, %85 : vector<2x32xf32>
    %c1_i32 = arith.constant 1 : i32
    %87 = tpu.concatenate %65, %86 in 1 : vector<2x32xf32>, vector<2x32xf32> -> vector<2x64xf32>
    %cst_34 = arith.constant dense<0.000000e+00> : vector<2x192xf32>
    %88 = tpu.matmul %87, %33, %cst_34 {dimension_numbers = #tpu.dot_dimension_numbers<[1], [0], [0], [1], [0, 0, 1, 1], [], []>} : vector<2x64xf32>, vector<64x192xf32>, vector<2x192xf32> -> vector<2x192xf32>
    %89 = vector.broadcast %34 : vector<1x192xf32> to vector<2x192xf32>
    %90 = arith.addf %88, %89 : vector<2x192xf32>
    %91 = vector.extract_strided_slice %90 {offsets = [0, 0], sizes = [2, 96], strides = [1, 1]} : vector<2x192xf32> to vector<2x96xf32>
    %92 = vector.extract_strided_slice %90 {offsets = [0, 96], sizes = [2, 96], strides = [1, 1]} : vector<2x192xf32> to vector<2x96xf32>
    %93 = arith.index_cast %c1_i32 : i32 to index
    %c0_35 = arith.constant 0 : index
    %c0_36 = arith.constant 0 : index
    %94 = vector.load %arg12[%93, %c0_35, %c0_36] : memref<8x2x96xf32, #tpu.memory_space<vmem>>, vector<1x2x96xf32>
    %95 = vector.shape_cast %94 : vector<1x2x96xf32> to vector<2x96xf32>
    %96 = vector.extract_strided_slice %95 {offsets = [0, 0], sizes = [2, 64], strides = [1, 1]} : vector<2x96xf32> to vector<2x64xf32>
    %97 = vector.extract_strided_slice %91 {offsets = [0, 0], sizes = [2, 64], strides = [1, 1]} : vector<2x96xf32> to vector<2x64xf32>
    %98 = arith.addf %96, %97 : vector<2x64xf32>
    %99 = arith.negf %98 : vector<2x64xf32>
    %100 = math.exp %99 : vector<2x64xf32>
    %cst_37 = arith.constant 1.000000e+00 : f32
    %101 = vector.broadcast %cst_37 : f32 to vector<2x64xf32>
    %102 = arith.addf %101, %100 : vector<2x64xf32>
    %103 = arith.divf %101, %102 : vector<2x64xf32>
    %104 = vector.extract_strided_slice %103 {offsets = [0, 0], sizes = [2, 32], strides = [1, 1]} : vector<2x64xf32> to vector<2x32xf32>
    %105 = vector.extract_strided_slice %103 {offsets = [0, 32], sizes = [2, 32], strides = [1, 1]} : vector<2x64xf32> to vector<2x32xf32>
    %106 = vector.extract_strided_slice %95 {offsets = [0, 64], sizes = [2, 32], strides = [1, 1]} : vector<2x96xf32> to vector<2x32xf32>
    %107 = vector.extract_strided_slice %91 {offsets = [0, 64], sizes = [2, 32], strides = [1, 1]} : vector<2x96xf32> to vector<2x32xf32>
    %108 = arith.mulf %104, %107 : vector<2x32xf32>
    %109 = arith.addf %106, %108 : vector<2x32xf32>
    %110 = math.tanh %109 : vector<2x32xf32>
    %111 = arith.subf %65, %110 : vector<2x32xf32>
    %112 = arith.mulf %105, %111 : vector<2x32xf32>
    %113 = arith.addf %110, %112 : vector<2x32xf32>
    %cst_38 = arith.constant dense<0.000000e+00> : vector<2x96xf32>
    %114 = tpu.matmul %113, %35, %cst_38 {dimension_numbers = #tpu.dot_dimension_numbers<[1], [0], [0], [1], [0, 0, 1, 1], [], []>} : vector<2x32xf32>, vector<32x96xf32>, vector<2x96xf32> -> vector<2x96xf32>
    %115 = vector.broadcast %36 : vector<1x96xf32> to vector<2x96xf32>
    %116 = arith.addf %114, %115 : vector<2x96xf32>
    %117 = vector.extract_strided_slice %116 {offsets = [0, 0], sizes = [2, 64], strides = [1, 1]} : vector<2x96xf32> to vector<2x64xf32>
    %118 = vector.extract_strided_slice %92 {offsets = [0, 0], sizes = [2, 64], strides = [1, 1]} : vector<2x96xf32> to vector<2x64xf32>
    %119 = arith.addf %117, %118 : vector<2x64xf32>
    %120 = arith.negf %119 : vector<2x64xf32>
    %121 = math.exp %120 : vector<2x64xf32>
    %cst_39 = arith.constant 1.000000e+00 : f32
    %122 = vector.broadcast %cst_39 : f32 to vector<2x64xf32>
    %123 = arith.addf %122, %121 : vector<2x64xf32>
    %124 = arith.divf %122, %123 : vector<2x64xf32>
    %125 = vector.extract_strided_slice %124 {offsets = [0, 0], sizes = [2, 32], strides = [1, 1]} : vector<2x64xf32> to vector<2x32xf32>
    %126 = vector.extract_strided_slice %124 {offsets = [0, 32], sizes = [2, 32], strides = [1, 1]} : vector<2x64xf32> to vector<2x32xf32>
    %127 = vector.extract_strided_slice %116 {offsets = [0, 64], sizes = [2, 32], strides = [1, 1]} : vector<2x96xf32> to vector<2x32xf32>
    %128 = vector.extract_strided_slice %92 {offsets = [0, 64], sizes = [2, 32], strides = [1, 1]} : vector<2x96xf32> to vector<2x32xf32>
    %129 = arith.mulf %125, %128 : vector<2x32xf32>
    %130 = arith.addf %127, %129 : vector<2x32xf32>
    %131 = math.tanh %130 : vector<2x32xf32>
    %132 = arith.subf %86, %131 : vector<2x32xf32>
    %133 = arith.mulf %126, %132 : vector<2x32xf32>
    %134 = arith.addf %131, %133 : vector<2x32xf32>
    %c2_i32 = arith.constant 2 : i32
    %135 = tpu.concatenate %113, %134 in 1 : vector<2x32xf32>, vector<2x32xf32> -> vector<2x64xf32>
    %cst_40 = arith.constant dense<0.000000e+00> : vector<2x192xf32>
    %136 = tpu.matmul %135, %33, %cst_40 {dimension_numbers = #tpu.dot_dimension_numbers<[1], [0], [0], [1], [0, 0, 1, 1], [], []>} : vector<2x64xf32>, vector<64x192xf32>, vector<2x192xf32> -> vector<2x192xf32>
    %137 = vector.broadcast %34 : vector<1x192xf32> to vector<2x192xf32>
    %138 = arith.addf %136, %137 : vector<2x192xf32>
    %139 = vector.extract_strided_slice %138 {offsets = [0, 0], sizes = [2, 96], strides = [1, 1]} : vector<2x192xf32> to vector<2x96xf32>
    %140 = vector.extract_strided_slice %138 {offsets = [0, 96], sizes = [2, 96], strides = [1, 1]} : vector<2x192xf32> to vector<2x96xf32>
    %141 = arith.index_cast %c2_i32 : i32 to index
    %c0_41 = arith.constant 0 : index
    %c0_42 = arith.constant 0 : index
    %142 = vector.load %arg12[%141, %c0_41, %c0_42] : memref<8x2x96xf32, #tpu.memory_space<vmem>>, vector<1x2x96xf32>
    %143 = vector.shape_cast %142 : vector<1x2x96xf32> to vector<2x96xf32>
    %144 = vector.extract_strided_slice %143 {offsets = [0, 0], sizes = [2, 64], strides = [1, 1]} : vector<2x96xf32> to vector<2x64xf32>
    %145 = vector.extract_strided_slice %139 {offsets = [0, 0], sizes = [2, 64], strides = [1, 1]} : vector<2x96xf32> to vector<2x64xf32>
    %146 = arith.addf %144, %145 : vector<2x64xf32>
    %147 = arith.negf %146 : vector<2x64xf32>
    %148 = math.exp %147 : vector<2x64xf32>
    %cst_43 = arith.constant 1.000000e+00 : f32
    %149 = vector.broadcast %cst_43 : f32 to vector<2x64xf32>
    %150 = arith.addf %149, %148 : vector<2x64xf32>
    %151 = arith.divf %149, %150 : vector<2x64xf32>
    %152 = vector.extract_strided_slice %151 {offsets = [0, 0], sizes = [2, 32], strides = [1, 1]} : vector<2x64xf32> to vector<2x32xf32>
    %153 = vector.extract_strided_slice %151 {offsets = [0, 32], sizes = [2, 32], strides = [1, 1]} : vector<2x64xf32> to vector<2x32xf32>
    %154 = vector.extract_strided_slice %143 {offsets = [0, 64], sizes = [2, 32], strides = [1, 1]} : vector<2x96xf32> to vector<2x32xf32>
    %155 = vector.extract_strided_slice %139 {offsets = [0, 64], sizes = [2, 32], strides = [1, 1]} : vector<2x96xf32> to vector<2x32xf32>
    %156 = arith.mulf %152, %155 : vector<2x32xf32>
    %157 = arith.addf %154, %156 : vector<2x32xf32>
    %158 = math.tanh %157 : vector<2x32xf32>
    %159 = arith.subf %113, %158 : vector<2x32xf32>
    %160 = arith.mulf %153, %159 : vector<2x32xf32>
    %161 = arith.addf %158, %160 : vector<2x32xf32>
    %cst_44 = arith.constant dense<0.000000e+00> : vector<2x96xf32>
    %162 = tpu.matmul %161, %35, %cst_44 {dimension_numbers = #tpu.dot_dimension_numbers<[1], [0], [0], [1], [0, 0, 1, 1], [], []>} : vector<2x32xf32>, vector<32x96xf32>, vector<2x96xf32> -> vector<2x96xf32>
    %163 = vector.broadcast %36 : vector<1x96xf32> to vector<2x96xf32>
    %164 = arith.addf %162, %163 : vector<2x96xf32>
    %165 = vector.extract_strided_slice %164 {offsets = [0, 0], sizes = [2, 64], strides = [1, 1]} : vector<2x96xf32> to vector<2x64xf32>
    %166 = vector.extract_strided_slice %140 {offsets = [0, 0], sizes = [2, 64], strides = [1, 1]} : vector<2x96xf32> to vector<2x64xf32>
    %167 = arith.addf %165, %166 : vector<2x64xf32>
    %168 = arith.negf %167 : vector<2x64xf32>
    %169 = math.exp %168 : vector<2x64xf32>
    %cst_45 = arith.constant 1.000000e+00 : f32
    %170 = vector.broadcast %cst_45 : f32 to vector<2x64xf32>
    %171 = arith.addf %170, %169 : vector<2x64xf32>
    %172 = arith.divf %170, %171 : vector<2x64xf32>
    %173 = vector.extract_strided_slice %172 {offsets = [0, 0], sizes = [2, 32], strides = [1, 1]} : vector<2x64xf32> to vector<2x32xf32>
    %174 = vector.extract_strided_slice %172 {offsets = [0, 32], sizes = [2, 32], strides = [1, 1]} : vector<2x64xf32> to vector<2x32xf32>
    %175 = vector.extract_strided_slice %164 {offsets = [0, 64], sizes = [2, 32], strides = [1, 1]} : vector<2x96xf32> to vector<2x32xf32>
    %176 = vector.extract_strided_slice %140 {offsets = [0, 64], sizes = [2, 32], strides = [1, 1]} : vector<2x96xf32> to vector<2x32xf32>
    %177 = arith.mulf %173, %176 : vector<2x32xf32>
    %178 = arith.addf %175, %177 : vector<2x32xf32>
    %179 = math.tanh %178 : vector<2x32xf32>
    %180 = arith.subf %134, %179 : vector<2x32xf32>
    %181 = arith.mulf %174, %180 : vector<2x32xf32>
    %182 = arith.addf %179, %181 : vector<2x32xf32>
    %c3_i32 = arith.constant 3 : i32
    %183 = tpu.concatenate %161, %182 in 1 : vector<2x32xf32>, vector<2x32xf32> -> vector<2x64xf32>
    %cst_46 = arith.constant dense<0.000000e+00> : vector<2x192xf32>
    %184 = tpu.matmul %183, %33, %cst_46 {dimension_numbers = #tpu.dot_dimension_numbers<[1], [0], [0], [1], [0, 0, 1, 1], [], []>} : vector<2x64xf32>, vector<64x192xf32>, vector<2x192xf32> -> vector<2x192xf32>
    %185 = vector.broadcast %34 : vector<1x192xf32> to vector<2x192xf32>
    %186 = arith.addf %184, %185 : vector<2x192xf32>
    %187 = vector.extract_strided_slice %186 {offsets = [0, 0], sizes = [2, 96], strides = [1, 1]} : vector<2x192xf32> to vector<2x96xf32>
    %188 = vector.extract_strided_slice %186 {offsets = [0, 96], sizes = [2, 96], strides = [1, 1]} : vector<2x192xf32> to vector<2x96xf32>
    %189 = arith.index_cast %c3_i32 : i32 to index
    %c0_47 = arith.constant 0 : index
    %c0_48 = arith.constant 0 : index
    %190 = vector.load %arg12[%189, %c0_47, %c0_48] : memref<8x2x96xf32, #tpu.memory_space<vmem>>, vector<1x2x96xf32>
    %191 = vector.shape_cast %190 : vector<1x2x96xf32> to vector<2x96xf32>
    %192 = vector.extract_strided_slice %191 {offsets = [0, 0], sizes = [2, 64], strides = [1, 1]} : vector<2x96xf32> to vector<2x64xf32>
    %193 = vector.extract_strided_slice %187 {offsets = [0, 0], sizes = [2, 64], strides = [1, 1]} : vector<2x96xf32> to vector<2x64xf32>
    %194 = arith.addf %192, %193 : vector<2x64xf32>
    %195 = arith.negf %194 : vector<2x64xf32>
    %196 = math.exp %195 : vector<2x64xf32>
    %cst_49 = arith.constant 1.000000e+00 : f32
    %197 = vector.broadcast %cst_49 : f32 to vector<2x64xf32>
    %198 = arith.addf %197, %196 : vector<2x64xf32>
    %199 = arith.divf %197, %198 : vector<2x64xf32>
    %200 = vector.extract_strided_slice %199 {offsets = [0, 0], sizes = [2, 32], strides = [1, 1]} : vector<2x64xf32> to vector<2x32xf32>
    %201 = vector.extract_strided_slice %199 {offsets = [0, 32], sizes = [2, 32], strides = [1, 1]} : vector<2x64xf32> to vector<2x32xf32>
    %202 = vector.extract_strided_slice %191 {offsets = [0, 64], sizes = [2, 32], strides = [1, 1]} : vector<2x96xf32> to vector<2x32xf32>
    %203 = vector.extract_strided_slice %187 {offsets = [0, 64], sizes = [2, 32], strides = [1, 1]} : vector<2x96xf32> to vector<2x32xf32>
    %204 = arith.mulf %200, %203 : vector<2x32xf32>
    %205 = arith.addf %202, %204 : vector<2x32xf32>
    %206 = math.tanh %205 : vector<2x32xf32>
    %207 = arith.subf %161, %206 : vector<2x32xf32>
    %208 = arith.mulf %201, %207 : vector<2x32xf32>
    %209 = arith.addf %206, %208 : vector<2x32xf32>
    %cst_50 = arith.constant dense<0.000000e+00> : vector<2x96xf32>
    %210 = tpu.matmul %209, %35, %cst_50 {dimension_numbers = #tpu.dot_dimension_numbers<[1], [0], [0], [1], [0, 0, 1, 1], [], []>} : vector<2x32xf32>, vector<32x96xf32>, vector<2x96xf32> -> vector<2x96xf32>
    %211 = vector.broadcast %36 : vector<1x96xf32> to vector<2x96xf32>
    %212 = arith.addf %210, %211 : vector<2x96xf32>
    %213 = vector.extract_strided_slice %212 {offsets = [0, 0], sizes = [2, 64], strides = [1, 1]} : vector<2x96xf32> to vector<2x64xf32>
    %214 = vector.extract_strided_slice %188 {offsets = [0, 0], sizes = [2, 64], strides = [1, 1]} : vector<2x96xf32> to vector<2x64xf32>
    %215 = arith.addf %213, %214 : vector<2x64xf32>
    %216 = arith.negf %215 : vector<2x64xf32>
    %217 = math.exp %216 : vector<2x64xf32>
    %cst_51 = arith.constant 1.000000e+00 : f32
    %218 = vector.broadcast %cst_51 : f32 to vector<2x64xf32>
    %219 = arith.addf %218, %217 : vector<2x64xf32>
    %220 = arith.divf %218, %219 : vector<2x64xf32>
    %221 = vector.extract_strided_slice %220 {offsets = [0, 0], sizes = [2, 32], strides = [1, 1]} : vector<2x64xf32> to vector<2x32xf32>
    %222 = vector.extract_strided_slice %220 {offsets = [0, 32], sizes = [2, 32], strides = [1, 1]} : vector<2x64xf32> to vector<2x32xf32>
    %223 = vector.extract_strided_slice %212 {offsets = [0, 64], sizes = [2, 32], strides = [1, 1]} : vector<2x96xf32> to vector<2x32xf32>
    %224 = vector.extract_strided_slice %188 {offsets = [0, 64], sizes = [2, 32], strides = [1, 1]} : vector<2x96xf32> to vector<2x32xf32>
    %225 = arith.mulf %221, %224 : vector<2x32xf32>
    %226 = arith.addf %223, %225 : vector<2x32xf32>
    %227 = math.tanh %226 : vector<2x32xf32>
    %228 = arith.subf %182, %227 : vector<2x32xf32>
    %229 = arith.mulf %222, %228 : vector<2x32xf32>
    %230 = arith.addf %227, %229 : vector<2x32xf32>
    %c4_i32 = arith.constant 4 : i32
    %231 = tpu.concatenate %209, %230 in 1 : vector<2x32xf32>, vector<2x32xf32> -> vector<2x64xf32>
    %cst_52 = arith.constant dense<0.000000e+00> : vector<2x192xf32>
    %232 = tpu.matmul %231, %33, %cst_52 {dimension_numbers = #tpu.dot_dimension_numbers<[1], [0], [0], [1], [0, 0, 1, 1], [], []>} : vector<2x64xf32>, vector<64x192xf32>, vector<2x192xf32> -> vector<2x192xf32>
    %233 = vector.broadcast %34 : vector<1x192xf32> to vector<2x192xf32>
    %234 = arith.addf %232, %233 : vector<2x192xf32>
    %235 = vector.extract_strided_slice %234 {offsets = [0, 0], sizes = [2, 96], strides = [1, 1]} : vector<2x192xf32> to vector<2x96xf32>
    %236 = vector.extract_strided_slice %234 {offsets = [0, 96], sizes = [2, 96], strides = [1, 1]} : vector<2x192xf32> to vector<2x96xf32>
    %237 = arith.index_cast %c4_i32 : i32 to index
    %c0_53 = arith.constant 0 : index
    %c0_54 = arith.constant 0 : index
    %238 = vector.load %arg12[%237, %c0_53, %c0_54] : memref<8x2x96xf32, #tpu.memory_space<vmem>>, vector<1x2x96xf32>
    %239 = vector.shape_cast %238 : vector<1x2x96xf32> to vector<2x96xf32>
    %240 = vector.extract_strided_slice %239 {offsets = [0, 0], sizes = [2, 64], strides = [1, 1]} : vector<2x96xf32> to vector<2x64xf32>
    %241 = vector.extract_strided_slice %235 {offsets = [0, 0], sizes = [2, 64], strides = [1, 1]} : vector<2x96xf32> to vector<2x64xf32>
    %242 = arith.addf %240, %241 : vector<2x64xf32>
    %243 = arith.negf %242 : vector<2x64xf32>
    %244 = math.exp %243 : vector<2x64xf32>
    %cst_55 = arith.constant 1.000000e+00 : f32
    %245 = vector.broadcast %cst_55 : f32 to vector<2x64xf32>
    %246 = arith.addf %245, %244 : vector<2x64xf32>
    %247 = arith.divf %245, %246 : vector<2x64xf32>
    %248 = vector.extract_strided_slice %247 {offsets = [0, 0], sizes = [2, 32], strides = [1, 1]} : vector<2x64xf32> to vector<2x32xf32>
    %249 = vector.extract_strided_slice %247 {offsets = [0, 32], sizes = [2, 32], strides = [1, 1]} : vector<2x64xf32> to vector<2x32xf32>
    %250 = vector.extract_strided_slice %239 {offsets = [0, 64], sizes = [2, 32], strides = [1, 1]} : vector<2x96xf32> to vector<2x32xf32>
    %251 = vector.extract_strided_slice %235 {offsets = [0, 64], sizes = [2, 32], strides = [1, 1]} : vector<2x96xf32> to vector<2x32xf32>
    %252 = arith.mulf %248, %251 : vector<2x32xf32>
    %253 = arith.addf %250, %252 : vector<2x32xf32>
    %254 = math.tanh %253 : vector<2x32xf32>
    %255 = arith.subf %209, %254 : vector<2x32xf32>
    %256 = arith.mulf %249, %255 : vector<2x32xf32>
    %257 = arith.addf %254, %256 : vector<2x32xf32>
    %cst_56 = arith.constant dense<0.000000e+00> : vector<2x96xf32>
    %258 = tpu.matmul %257, %35, %cst_56 {dimension_numbers = #tpu.dot_dimension_numbers<[1], [0], [0], [1], [0, 0, 1, 1], [], []>} : vector<2x32xf32>, vector<32x96xf32>, vector<2x96xf32> -> vector<2x96xf32>
    %259 = vector.broadcast %36 : vector<1x96xf32> to vector<2x96xf32>
    %260 = arith.addf %258, %259 : vector<2x96xf32>
    %261 = vector.extract_strided_slice %260 {offsets = [0, 0], sizes = [2, 64], strides = [1, 1]} : vector<2x96xf32> to vector<2x64xf32>
    %262 = vector.extract_strided_slice %236 {offsets = [0, 0], sizes = [2, 64], strides = [1, 1]} : vector<2x96xf32> to vector<2x64xf32>
    %263 = arith.addf %261, %262 : vector<2x64xf32>
    %264 = arith.negf %263 : vector<2x64xf32>
    %265 = math.exp %264 : vector<2x64xf32>
    %cst_57 = arith.constant 1.000000e+00 : f32
    %266 = vector.broadcast %cst_57 : f32 to vector<2x64xf32>
    %267 = arith.addf %266, %265 : vector<2x64xf32>
    %268 = arith.divf %266, %267 : vector<2x64xf32>
    %269 = vector.extract_strided_slice %268 {offsets = [0, 0], sizes = [2, 32], strides = [1, 1]} : vector<2x64xf32> to vector<2x32xf32>
    %270 = vector.extract_strided_slice %268 {offsets = [0, 32], sizes = [2, 32], strides = [1, 1]} : vector<2x64xf32> to vector<2x32xf32>
    %271 = vector.extract_strided_slice %260 {offsets = [0, 64], sizes = [2, 32], strides = [1, 1]} : vector<2x96xf32> to vector<2x32xf32>
    %272 = vector.extract_strided_slice %236 {offsets = [0, 64], sizes = [2, 32], strides = [1, 1]} : vector<2x96xf32> to vector<2x32xf32>
    %273 = arith.mulf %269, %272 : vector<2x32xf32>
    %274 = arith.addf %271, %273 : vector<2x32xf32>
    %275 = math.tanh %274 : vector<2x32xf32>
    %276 = arith.subf %230, %275 : vector<2x32xf32>
    %277 = arith.mulf %270, %276 : vector<2x32xf32>
    %278 = arith.addf %275, %277 : vector<2x32xf32>
    %c5_i32 = arith.constant 5 : i32
    %279 = tpu.concatenate %257, %278 in 1 : vector<2x32xf32>, vector<2x32xf32> -> vector<2x64xf32>
    %cst_58 = arith.constant dense<0.000000e+00> : vector<2x192xf32>
    %280 = tpu.matmul %279, %33, %cst_58 {dimension_numbers = #tpu.dot_dimension_numbers<[1], [0], [0], [1], [0, 0, 1, 1], [], []>} : vector<2x64xf32>, vector<64x192xf32>, vector<2x192xf32> -> vector<2x192xf32>
    %281 = vector.broadcast %34 : vector<1x192xf32> to vector<2x192xf32>
    %282 = arith.addf %280, %281 : vector<2x192xf32>
    %283 = vector.extract_strided_slice %282 {offsets = [0, 0], sizes = [2, 96], strides = [1, 1]} : vector<2x192xf32> to vector<2x96xf32>
    %284 = vector.extract_strided_slice %282 {offsets = [0, 96], sizes = [2, 96], strides = [1, 1]} : vector<2x192xf32> to vector<2x96xf32>
    %285 = arith.index_cast %c5_i32 : i32 to index
    %c0_59 = arith.constant 0 : index
    %c0_60 = arith.constant 0 : index
    %286 = vector.load %arg12[%285, %c0_59, %c0_60] : memref<8x2x96xf32, #tpu.memory_space<vmem>>, vector<1x2x96xf32>
    %287 = vector.shape_cast %286 : vector<1x2x96xf32> to vector<2x96xf32>
    %288 = vector.extract_strided_slice %287 {offsets = [0, 0], sizes = [2, 64], strides = [1, 1]} : vector<2x96xf32> to vector<2x64xf32>
    %289 = vector.extract_strided_slice %283 {offsets = [0, 0], sizes = [2, 64], strides = [1, 1]} : vector<2x96xf32> to vector<2x64xf32>
    %290 = arith.addf %288, %289 : vector<2x64xf32>
    %291 = arith.negf %290 : vector<2x64xf32>
    %292 = math.exp %291 : vector<2x64xf32>
    %cst_61 = arith.constant 1.000000e+00 : f32
    %293 = vector.broadcast %cst_61 : f32 to vector<2x64xf32>
    %294 = arith.addf %293, %292 : vector<2x64xf32>
    %295 = arith.divf %293, %294 : vector<2x64xf32>
    %296 = vector.extract_strided_slice %295 {offsets = [0, 0], sizes = [2, 32], strides = [1, 1]} : vector<2x64xf32> to vector<2x32xf32>
    %297 = vector.extract_strided_slice %295 {offsets = [0, 32], sizes = [2, 32], strides = [1, 1]} : vector<2x64xf32> to vector<2x32xf32>
    %298 = vector.extract_strided_slice %287 {offsets = [0, 64], sizes = [2, 32], strides = [1, 1]} : vector<2x96xf32> to vector<2x32xf32>
    %299 = vector.extract_strided_slice %283 {offsets = [0, 64], sizes = [2, 32], strides = [1, 1]} : vector<2x96xf32> to vector<2x32xf32>
    %300 = arith.mulf %296, %299 : vector<2x32xf32>
    %301 = arith.addf %298, %300 : vector<2x32xf32>
    %302 = math.tanh %301 : vector<2x32xf32>
    %303 = arith.subf %257, %302 : vector<2x32xf32>
    %304 = arith.mulf %297, %303 : vector<2x32xf32>
    %305 = arith.addf %302, %304 : vector<2x32xf32>
    %cst_62 = arith.constant dense<0.000000e+00> : vector<2x96xf32>
    %306 = tpu.matmul %305, %35, %cst_62 {dimension_numbers = #tpu.dot_dimension_numbers<[1], [0], [0], [1], [0, 0, 1, 1], [], []>} : vector<2x32xf32>, vector<32x96xf32>, vector<2x96xf32> -> vector<2x96xf32>
    %307 = vector.broadcast %36 : vector<1x96xf32> to vector<2x96xf32>
    %308 = arith.addf %306, %307 : vector<2x96xf32>
    %309 = vector.extract_strided_slice %308 {offsets = [0, 0], sizes = [2, 64], strides = [1, 1]} : vector<2x96xf32> to vector<2x64xf32>
    %310 = vector.extract_strided_slice %284 {offsets = [0, 0], sizes = [2, 64], strides = [1, 1]} : vector<2x96xf32> to vector<2x64xf32>
    %311 = arith.addf %309, %310 : vector<2x64xf32>
    %312 = arith.negf %311 : vector<2x64xf32>
    %313 = math.exp %312 : vector<2x64xf32>
    %cst_63 = arith.constant 1.000000e+00 : f32
    %314 = vector.broadcast %cst_63 : f32 to vector<2x64xf32>
    %315 = arith.addf %314, %313 : vector<2x64xf32>
    %316 = arith.divf %314, %315 : vector<2x64xf32>
    %317 = vector.extract_strided_slice %316 {offsets = [0, 0], sizes = [2, 32], strides = [1, 1]} : vector<2x64xf32> to vector<2x32xf32>
    %318 = vector.extract_strided_slice %316 {offsets = [0, 32], sizes = [2, 32], strides = [1, 1]} : vector<2x64xf32> to vector<2x32xf32>
    %319 = vector.extract_strided_slice %308 {offsets = [0, 64], sizes = [2, 32], strides = [1, 1]} : vector<2x96xf32> to vector<2x32xf32>
    %320 = vector.extract_strided_slice %284 {offsets = [0, 64], sizes = [2, 32], strides = [1, 1]} : vector<2x96xf32> to vector<2x32xf32>
    %321 = arith.mulf %317, %320 : vector<2x32xf32>
    %322 = arith.addf %319, %321 : vector<2x32xf32>
    %323 = math.tanh %322 : vector<2x32xf32>
    %324 = arith.subf %278, %323 : vector<2x32xf32>
    %325 = arith.mulf %318, %324 : vector<2x32xf32>
    %326 = arith.addf %323, %325 : vector<2x32xf32>
    %c6_i32 = arith.constant 6 : i32
    %327 = tpu.concatenate %305, %326 in 1 : vector<2x32xf32>, vector<2x32xf32> -> vector<2x64xf32>
    %cst_64 = arith.constant dense<0.000000e+00> : vector<2x192xf32>
    %328 = tpu.matmul %327, %33, %cst_64 {dimension_numbers = #tpu.dot_dimension_numbers<[1], [0], [0], [1], [0, 0, 1, 1], [], []>} : vector<2x64xf32>, vector<64x192xf32>, vector<2x192xf32> -> vector<2x192xf32>
    %329 = vector.broadcast %34 : vector<1x192xf32> to vector<2x192xf32>
    %330 = arith.addf %328, %329 : vector<2x192xf32>
    %331 = vector.extract_strided_slice %330 {offsets = [0, 0], sizes = [2, 96], strides = [1, 1]} : vector<2x192xf32> to vector<2x96xf32>
    %332 = vector.extract_strided_slice %330 {offsets = [0, 96], sizes = [2, 96], strides = [1, 1]} : vector<2x192xf32> to vector<2x96xf32>
    %333 = arith.index_cast %c6_i32 : i32 to index
    %c0_65 = arith.constant 0 : index
    %c0_66 = arith.constant 0 : index
    %334 = vector.load %arg12[%333, %c0_65, %c0_66] : memref<8x2x96xf32, #tpu.memory_space<vmem>>, vector<1x2x96xf32>
    %335 = vector.shape_cast %334 : vector<1x2x96xf32> to vector<2x96xf32>
    %336 = vector.extract_strided_slice %335 {offsets = [0, 0], sizes = [2, 64], strides = [1, 1]} : vector<2x96xf32> to vector<2x64xf32>
    %337 = vector.extract_strided_slice %331 {offsets = [0, 0], sizes = [2, 64], strides = [1, 1]} : vector<2x96xf32> to vector<2x64xf32>
    %338 = arith.addf %336, %337 : vector<2x64xf32>
    %339 = arith.negf %338 : vector<2x64xf32>
    %340 = math.exp %339 : vector<2x64xf32>
    %cst_67 = arith.constant 1.000000e+00 : f32
    %341 = vector.broadcast %cst_67 : f32 to vector<2x64xf32>
    %342 = arith.addf %341, %340 : vector<2x64xf32>
    %343 = arith.divf %341, %342 : vector<2x64xf32>
    %344 = vector.extract_strided_slice %343 {offsets = [0, 0], sizes = [2, 32], strides = [1, 1]} : vector<2x64xf32> to vector<2x32xf32>
    %345 = vector.extract_strided_slice %343 {offsets = [0, 32], sizes = [2, 32], strides = [1, 1]} : vector<2x64xf32> to vector<2x32xf32>
    %346 = vector.extract_strided_slice %335 {offsets = [0, 64], sizes = [2, 32], strides = [1, 1]} : vector<2x96xf32> to vector<2x32xf32>
    %347 = vector.extract_strided_slice %331 {offsets = [0, 64], sizes = [2, 32], strides = [1, 1]} : vector<2x96xf32> to vector<2x32xf32>
    %348 = arith.mulf %344, %347 : vector<2x32xf32>
    %349 = arith.addf %346, %348 : vector<2x32xf32>
    %350 = math.tanh %349 : vector<2x32xf32>
    %351 = arith.subf %305, %350 : vector<2x32xf32>
    %352 = arith.mulf %345, %351 : vector<2x32xf32>
    %353 = arith.addf %350, %352 : vector<2x32xf32>
    %cst_68 = arith.constant dense<0.000000e+00> : vector<2x96xf32>
    %354 = tpu.matmul %353, %35, %cst_68 {dimension_numbers = #tpu.dot_dimension_numbers<[1], [0], [0], [1], [0, 0, 1, 1], [], []>} : vector<2x32xf32>, vector<32x96xf32>, vector<2x96xf32> -> vector<2x96xf32>
    %355 = vector.broadcast %36 : vector<1x96xf32> to vector<2x96xf32>
    %356 = arith.addf %354, %355 : vector<2x96xf32>
    %357 = vector.extract_strided_slice %356 {offsets = [0, 0], sizes = [2, 64], strides = [1, 1]} : vector<2x96xf32> to vector<2x64xf32>
    %358 = vector.extract_strided_slice %332 {offsets = [0, 0], sizes = [2, 64], strides = [1, 1]} : vector<2x96xf32> to vector<2x64xf32>
    %359 = arith.addf %357, %358 : vector<2x64xf32>
    %360 = arith.negf %359 : vector<2x64xf32>
    %361 = math.exp %360 : vector<2x64xf32>
    %cst_69 = arith.constant 1.000000e+00 : f32
    %362 = vector.broadcast %cst_69 : f32 to vector<2x64xf32>
    %363 = arith.addf %362, %361 : vector<2x64xf32>
    %364 = arith.divf %362, %363 : vector<2x64xf32>
    %365 = vector.extract_strided_slice %364 {offsets = [0, 0], sizes = [2, 32], strides = [1, 1]} : vector<2x64xf32> to vector<2x32xf32>
    %366 = vector.extract_strided_slice %364 {offsets = [0, 32], sizes = [2, 32], strides = [1, 1]} : vector<2x64xf32> to vector<2x32xf32>
    %367 = vector.extract_strided_slice %356 {offsets = [0, 64], sizes = [2, 32], strides = [1, 1]} : vector<2x96xf32> to vector<2x32xf32>
    %368 = vector.extract_strided_slice %332 {offsets = [0, 64], sizes = [2, 32], strides = [1, 1]} : vector<2x96xf32> to vector<2x32xf32>
    %369 = arith.mulf %365, %368 : vector<2x32xf32>
    %370 = arith.addf %367, %369 : vector<2x32xf32>
    %371 = math.tanh %370 : vector<2x32xf32>
    %372 = arith.subf %326, %371 : vector<2x32xf32>
    %373 = arith.mulf %366, %372 : vector<2x32xf32>
    %374 = arith.addf %371, %373 : vector<2x32xf32>
    %c7_i32 = arith.constant 7 : i32
    %375 = tpu.concatenate %353, %374 in 1 : vector<2x32xf32>, vector<2x32xf32> -> vector<2x64xf32>
    %cst_70 = arith.constant dense<0.000000e+00> : vector<2x192xf32>
    %376 = tpu.matmul %375, %33, %cst_70 {dimension_numbers = #tpu.dot_dimension_numbers<[1], [0], [0], [1], [0, 0, 1, 1], [], []>} : vector<2x64xf32>, vector<64x192xf32>, vector<2x192xf32> -> vector<2x192xf32>
    %377 = vector.broadcast %34 : vector<1x192xf32> to vector<2x192xf32>
    %378 = arith.addf %376, %377 : vector<2x192xf32>
    %379 = vector.extract_strided_slice %378 {offsets = [0, 0], sizes = [2, 96], strides = [1, 1]} : vector<2x192xf32> to vector<2x96xf32>
    %380 = vector.extract_strided_slice %378 {offsets = [0, 96], sizes = [2, 96], strides = [1, 1]} : vector<2x192xf32> to vector<2x96xf32>
    %381 = arith.index_cast %c7_i32 : i32 to index
    %c0_71 = arith.constant 0 : index
    %c0_72 = arith.constant 0 : index
    %382 = vector.load %arg12[%381, %c0_71, %c0_72] : memref<8x2x96xf32, #tpu.memory_space<vmem>>, vector<1x2x96xf32>
    %383 = vector.shape_cast %382 : vector<1x2x96xf32> to vector<2x96xf32>
    %384 = vector.extract_strided_slice %383 {offsets = [0, 0], sizes = [2, 64], strides = [1, 1]} : vector<2x96xf32> to vector<2x64xf32>
    %385 = vector.extract_strided_slice %379 {offsets = [0, 0], sizes = [2, 64], strides = [1, 1]} : vector<2x96xf32> to vector<2x64xf32>
    %386 = arith.addf %384, %385 : vector<2x64xf32>
    %387 = arith.negf %386 : vector<2x64xf32>
    %388 = math.exp %387 : vector<2x64xf32>
    %cst_73 = arith.constant 1.000000e+00 : f32
    %389 = vector.broadcast %cst_73 : f32 to vector<2x64xf32>
    %390 = arith.addf %389, %388 : vector<2x64xf32>
    %391 = arith.divf %389, %390 : vector<2x64xf32>
    %392 = vector.extract_strided_slice %391 {offsets = [0, 0], sizes = [2, 32], strides = [1, 1]} : vector<2x64xf32> to vector<2x32xf32>
    %393 = vector.extract_strided_slice %391 {offsets = [0, 32], sizes = [2, 32], strides = [1, 1]} : vector<2x64xf32> to vector<2x32xf32>
    %394 = vector.extract_strided_slice %383 {offsets = [0, 64], sizes = [2, 32], strides = [1, 1]} : vector<2x96xf32> to vector<2x32xf32>
    %395 = vector.extract_strided_slice %379 {offsets = [0, 64], sizes = [2, 32], strides = [1, 1]} : vector<2x96xf32> to vector<2x32xf32>
    %396 = arith.mulf %392, %395 : vector<2x32xf32>
    %397 = arith.addf %394, %396 : vector<2x32xf32>
    %398 = math.tanh %397 : vector<2x32xf32>
    %399 = arith.subf %353, %398 : vector<2x32xf32>
    %400 = arith.mulf %393, %399 : vector<2x32xf32>
    %401 = arith.addf %398, %400 : vector<2x32xf32>
    %cst_74 = arith.constant dense<0.000000e+00> : vector<2x96xf32>
    %402 = tpu.matmul %401, %35, %cst_74 {dimension_numbers = #tpu.dot_dimension_numbers<[1], [0], [0], [1], [0, 0, 1, 1], [], []>} : vector<2x32xf32>, vector<32x96xf32>, vector<2x96xf32> -> vector<2x96xf32>
    %403 = vector.broadcast %36 : vector<1x96xf32> to vector<2x96xf32>
    %404 = arith.addf %402, %403 : vector<2x96xf32>
    %405 = vector.extract_strided_slice %404 {offsets = [0, 0], sizes = [2, 64], strides = [1, 1]} : vector<2x96xf32> to vector<2x64xf32>
    %406 = vector.extract_strided_slice %380 {offsets = [0, 0], sizes = [2, 64], strides = [1, 1]} : vector<2x96xf32> to vector<2x64xf32>
    %407 = arith.addf %405, %406 : vector<2x64xf32>
    %408 = arith.negf %407 : vector<2x64xf32>
    %409 = math.exp %408 : vector<2x64xf32>
    %cst_75 = arith.constant 1.000000e+00 : f32
    %410 = vector.broadcast %cst_75 : f32 to vector<2x64xf32>
    %411 = arith.addf %410, %409 : vector<2x64xf32>
    %412 = arith.divf %410, %411 : vector<2x64xf32>
    %413 = vector.extract_strided_slice %412 {offsets = [0, 0], sizes = [2, 32], strides = [1, 1]} : vector<2x64xf32> to vector<2x32xf32>
    %414 = vector.extract_strided_slice %412 {offsets = [0, 32], sizes = [2, 32], strides = [1, 1]} : vector<2x64xf32> to vector<2x32xf32>
    %415 = vector.extract_strided_slice %404 {offsets = [0, 64], sizes = [2, 32], strides = [1, 1]} : vector<2x96xf32> to vector<2x32xf32>
    %416 = vector.extract_strided_slice %380 {offsets = [0, 64], sizes = [2, 32], strides = [1, 1]} : vector<2x96xf32> to vector<2x32xf32>
    %417 = arith.mulf %413, %416 : vector<2x32xf32>
    %418 = arith.addf %415, %417 : vector<2x32xf32>
    %419 = math.tanh %418 : vector<2x32xf32>
    %420 = arith.subf %374, %419 : vector<2x32xf32>
    %421 = arith.mulf %414, %420 : vector<2x32xf32>
    %422 = arith.addf %419, %421 : vector<2x32xf32>
    %c8_i32 = arith.constant 8 : i32
    %c0_76 = arith.constant 0 : index
    %c0_77 = arith.constant 0 : index
    %423 = vector.load %arg9[%c0_76, %c0_77] : memref<1x32xf32, #tpu.memory_space<vmem>>, vector<1x32xf32>
    %424 = vector.broadcast %423 : vector<1x32xf32> to vector<2x32xf32>
    %425 = arith.mulf %422, %424 : vector<2x32xf32>
    %cst_78 = arith.constant dense<0.000000e+00> : vector<2xf32>
    %426 = vector.multi_reduction <add>, %425, %cst_78 [1] : vector<2x32xf32> to vector<2xf32>
    %427 = vector.shape_cast %426 : vector<2xf32> to vector<2x1xf32>
    %c0_79 = arith.constant 0 : index
    %c0_80 = arith.constant 0 : index
    %428 = vector.load %arg10[%c0_79, %c0_80] : memref<1x1xf32, #tpu.memory_space<vmem>>, vector<1x1xf32>
    %429 = vector.broadcast %428 : vector<1x1xf32> to vector<2x1xf32>
    %430 = arith.addf %427, %429 : vector<2x1xf32>
    %431 = arith.negf %430 : vector<2x1xf32>
    %432 = math.exp %431 : vector<2x1xf32>
    %cst_81 = arith.constant 1.000000e+00 : f32
    %433 = vector.broadcast %cst_81 : f32 to vector<2x1xf32>
    %434 = arith.addf %433, %432 : vector<2x1xf32>
    %435 = arith.divf %433, %434 : vector<2x1xf32>
    %c0_82 = arith.constant 0 : index
    %c0_83 = arith.constant 0 : index
    %436 = vector.load %arg11[%c0_82, %c0_83] : memref<2x1xf32, #tpu.memory_space<vmem>>, vector<2x1xf32>
    tpu.vector_store %arg11[%c0_82, %c0_83], %435 {strides = array<i32>} : memref<2x1xf32, #tpu.memory_space<vmem>>, vector<2x1xf32>,
    return
  }
}

</mosaic_0001>

<llo_original>
// kernel: tpu_custom_call.1
$region0: #{tpu_custom_call.1}
  #allocation0 [shape = 'u32[]', space=smem, size = 0x4, offset = 0x4, fixed_abs, tag = 'smem constant byte address 0x4 - core index']
  #allocation1 [shape = 'u32[72,128]{1,0:T(1,128)}', space=vmem, size = 0x9000, scoped, tag = 'internal scratch']
  #allocation2 [shape = 'f32[8,2,96]{2,1,0:T(2,128)}', space=vmem, size = 0x2000, scoped, tag = 'scratch operand']
  #allocation3 [shape = 'f32[1,1]{1,0:T(1,128)S(1)}', space=vmem, size = 0x200, scoped, tag = 'scoped memory for tpu_custom_call.1']
  %s0 = inlined_call_operand.hbm [shape: f32[8,2,32], index: 0, kind: input, shape index: {}]
  %s1 = inlined_call_operand.vmem [shape: f32[1,32], index: 1, kind: input, shape index: {}]
  %s2 = inlined_call_operand.hbm [shape: f32[1,32], index: 2, kind: input, shape index: {}]
  %s3 = inlined_call_operand.hbm [shape: f32[32,96], index: 3, kind: input, shape index: {}]
  %s4 = inlined_call_operand.vmem [shape: f32[1,96], index: 4, kind: input, shape index: {}]
  %s5 = inlined_call_operand.hbm [shape: f32[64,192], index: 5, kind: input, shape index: {}]
  %s6 = inlined_call_operand.vmem [shape: f32[1,192], index: 6, kind: input, shape index: {}]
  %s7 = inlined_call_operand.hbm [shape: f32[32,96], index: 7, kind: input, shape index: {}]
  %s8 = inlined_call_operand.vmem [shape: f32[1,96], index: 8, kind: input, shape index: {}]
  %s9 = inlined_call_operand.vmem [shape: f32[1,32], index: 9, kind: input, shape index: {}]
  %s10 = inlined_call_operand.<no memory space> [shape: f32[1,1], index: 10, kind: input, shape index: {}]
  %s11 = inlined_call_operand.vmem [shape: f32[2,1], index: 11, kind: output, shape index: {}]
  %s12 = sld [smem:[#allocation0]]
  $region74: #{tpu_custom_call.1} parent=0
    _
  %s14 = ssub.s32 1, %s12
  %s15 = scalar_select 0, %s14, %s12
  %v16 = vstv %s10
  %17 = vst [vmem:[#allocation3] sm:$0x1] %v16
  $region1: #{tpu_custom_call.1} parent=0
    #allocation4 [shape = 'u8[8192]{0}', space=vmem, size = 0x2000, scoped, tag = 'input window, operand 0, single buffered']
    #allocation5 [shape = 's32[1]{0}', space=sflag, size = 0x4, scoped, tag = 'scoped memory for tpu_custom_call.1']
    #allocation6 [shape = 'u8[512]{0}', space=vmem, size = 0x400, scoped, tag = 'input window, operand 2, single buffered']
    #allocation7 [shape = 's32[1]{0}', space=sflag, size = 0x4, scoped, tag = 'scoped memory for tpu_custom_call.1']
    #allocation8 [shape = 'u8[16384]{0}', space=vmem, size = 0x4000, scoped, tag = 'input window, operand 3, single buffered']
    #allocation9 [shape = 'u8[65536]{0}', space=vmem, size = 0x10000, scoped, tag = 'input window, operand 5, single buffered']
    #allocation10 [shape = 's32[1]{0}', space=sflag, size = 0x4, scoped, tag = 'scoped memory for tpu_custom_call.1']
    #allocation11 [shape = 'u8[16384]{0}', space=vmem, size = 0x4000, scoped, tag = 'input window, operand 7, single buffered']
    %18 = vsyncpa [#allocation5], 0
    %19 = vsyncpa [#allocation7], 0
    %20 = vsyncpa [#allocation10], 0
    // Predicated region
    $region2: #{tpu_custom_call.1} parent=1 // pred_check
      _
    $region3: #{tpu_custom_call.1} parent=1 // pred_check_branch
      %22 = sbr.rel (0) target = $region5
    $region4: #{tpu_custom_call.1} parent=1 // pred_region
      %24 = vsyncadd [#allocation5], 0
      %s25 = sshll.u32 %s0, 4
      %s26 = int_to_ptr.hbm [resolvable:$true] %s25
      %s27 = sshll.u32 [#allocation4], 4
      %s28 = int_to_ptr.vmem [resolvable:$true] %s27
      %33 = dma.hbm_to_vmem [thread:$0]  %s26, 256, %s28, [#allocation5], 32, 32, 2
    $region5: #{tpu_custom_call.1} parent=1 // pred_fallthru
      _
    // Predicated region
    $region6: #{tpu_custom_call.1} parent=1 // pred_check
      _
    $region7: #{tpu_custom_call.1} parent=1 // pred_check_branch
      %35 = sbr.rel (0) target = $region9
    $region8: #{tpu_custom_call.1} parent=1 // pred_region
      _
    $region9: #{tpu_custom_call.1} parent=1 // pred_fallthru
      _
    // Predicated region
    $region10: #{tpu_custom_call.1} parent=1 // pred_check
      _
    $region11: #{tpu_custom_call.1} parent=1 // pred_check_branch
      %37 = sbr.rel (0) target = $region13
    $region12: #{tpu_custom_call.1} parent=1 // pred_region
      %39 = vsyncadd [#allocation7], 0
      %s41 = sshll.u32 %s2, 4
      %s42 = int_to_ptr.hbm [resolvable:$true] %s41
      %s43 = sshll.u32 [#allocation6], 4
      %s44 = int_to_ptr.vmem [resolvable:$true] %s43
      %46 = dma.hbm_to_vmem [thread:$0]  %s42, 16, %s44, [#allocation7]
    $region13: #{tpu_custom_call.1} parent=1 // pred_fallthru
      _
    // Predicated region
    $region14: #{tpu_custom_call.1} parent=1 // pred_check
      _
    $region15: #{tpu_custom_call.1} parent=1 // pred_check_branch
      %48 = sbr.rel (0) target = $region17
    $region16: #{tpu_custom_call.1} parent=1 // pred_region
      %50 = vsyncadd [#allocation7], 0
      %s51 = sshll.u32 %s3, 4
      %s52 = int_to_ptr.hbm [resolvable:$true] %s51
      %s53 = sshll.u32 [#allocation8], 4
      %s54 = int_to_ptr.vmem [resolvable:$true] %s53
      %59 = dma.hbm_to_vmem [thread:$0]  %s52, 512, %s54, [#allocation7], 128, 128, 8
    $region17: #{tpu_custom_call.1} parent=1 // pred_fallthru
      _
    // Predicated region
    $region18: #{tpu_custom_call.1} parent=1 // pred_check
      _
    $region19: #{tpu_custom_call.1} parent=1 // pred_check_branch
      %61 = sbr.rel (0) target = $region21
    $region20: #{tpu_custom_call.1} parent=1 // pred_region
      _
    $region21: #{tpu_custom_call.1} parent=1 // pred_fallthru
      _
    // Predicated region
    $region22: #{tpu_custom_call.1} parent=1 // pred_check
      _
    $region23: #{tpu_custom_call.1} parent=1 // pred_check_branch
      %63 = sbr.rel (0) target = $region25
    $region24: #{tpu_custom_call.1} parent=1 // pred_region
      %65 = vsyncadd [#allocation10], 0
      %s66 = sshll.u32 %s5, 4
      %s67 = int_to_ptr.hbm [resolvable:$true] %s66
      %s68 = sshll.u32 [#allocation9], 4
      %s69 = int_to_ptr.vmem [resolvable:$true] %s68
      %74 = dma.hbm_to_vmem [thread:$0]  %s67, 2048, %s69, [#allocation10], 256, 256, 16
    $region25: #{tpu_custom_call.1} parent=1 // pred_fallthru
      _
    // Predicated region
    $region26: #{tpu_custom_call.1} parent=1 // pred_check
      _
    $region27: #{tpu_custom_call.1} parent=1 // pred_check_branch
      %76 = sbr.rel (0) target = $region29
    $region28: #{tpu_custom_call.1} parent=1 // pred_region
      _
    $region29: #{tpu_custom_call.1} parent=1 // pred_fallthru
      _
    // Predicated region
    $region30: #{tpu_custom_call.1} parent=1 // pred_check
      _
    $region31: #{tpu_custom_call.1} parent=1 // pred_check_branch
      %78 = sbr.rel (0) target = $region33
    $region32: #{tpu_custom_call.1} parent=1 // pred_region
      %80 = vsyncadd [#allocation10], 0
      %s81 = sshll.u32 %s7, 4
      %s82 = int_to_ptr.hbm [resolvable:$true] %s81
      %s83 = sshll.u32 [#allocation11], 4
      %s84 = int_to_ptr.vmem [resolvable:$true] %s83
      %89 = dma.hbm_to_vmem [thread:$0]  %s82, 512, %s84, [#allocation10], 128, 128, 8
    $region33: #{tpu_custom_call.1} parent=1 // pred_fallthru
      _
    // Predicated region
    $region34: #{tpu_custom_call.1} parent=1 // pred_check
      _
    $region35: #{tpu_custom_call.1} parent=1 // pred_check_branch
      %91 = sbr.rel (0) target = $region37
    $region36: #{tpu_custom_call.1} parent=1 // pred_region
      _
    $region37: #{tpu_custom_call.1} parent=1 // pred_fallthru
      _
    // Predicated region
    $region38: #{tpu_custom_call.1} parent=1 // pred_check
      _
    $region39: #{tpu_custom_call.1} parent=1 // pred_check_branch
      %93 = sbr.rel (0) target = $region41
    $region40: #{tpu_custom_call.1} parent=1 // pred_region
      _
    $region41: #{tpu_custom_call.1} parent=1 // pred_fallthru
      _
    // Predicated region
    $region42: #{tpu_custom_call.1} parent=1 // pred_check
      _
    $region43: #{tpu_custom_call.1} parent=1 // pred_check_branch
      %95 = sbr.rel (0) target = $region45
    $region44: #{tpu_custom_call.1} parent=1 // pred_region
      _
    $region45: #{tpu_custom_call.1} parent=1 // pred_fallthru
      _
    // Predicated region
    $region46: #{tpu_custom_call.1} parent=1 // pred_check
      _
    $region47: #{tpu_custom_call.1} parent=1 // pred_check_branch
      %97 = sbr.rel (0) target = $region49
    $region48: #{tpu_custom_call.1} parent=1 // pred_region
      %99 = dma.done [#allocation5], 256
    $region49: #{tpu_custom_call.1} parent=1 // pred_fallthru
      _
    // Predicated region
    $region50: #{tpu_custom_call.1} parent=1 // pred_check
      _
    $region51: #{tpu_custom_call.1} parent=1 // pred_check_branch
      %101 = sbr.rel (0) target = $region53
    $region52: #{tpu_custom_call.1} parent=1 // pred_region
      %103 = dma.done [#allocation7], 16
    $region53: #{tpu_custom_call.1} parent=1 // pred_fallthru
      _
    // Predicated region
    $region54: #{tpu_custom_call.1} parent=1 // pred_check
      _
    $region55: #{tpu_custom_call.1} parent=1 // pred_check_branch
      %105 = sbr.rel (0) target = $region57
    $region56: #{tpu_custom_call.1} parent=1 // pred_region
      %107 = dma.done [#allocation7], 512
    $region57: #{tpu_custom_call.1} parent=1 // pred_fallthru
      _
    // Predicated region
    $region58: #{tpu_custom_call.1} parent=1 // pred_check
      _
    $region59: #{tpu_custom_call.1} parent=1 // pred_check_branch
      %109 = sbr.rel (0) target = $region61
    $region60: #{tpu_custom_call.1} parent=1 // pred_region
      %111 = dma.done [#allocation10], 2048
    $region61: #{tpu_custom_call.1} parent=1 // pred_fallthru
      _
    // Predicated region
    $region62: #{tpu_custom_call.1} parent=1 // pred_check
      _
    $region63: #{tpu_custom_call.1} parent=1 // pred_check_branch
      %113 = sbr.rel (0) target = $region65
    $region64: #{tpu_custom_call.1} parent=1 // pred_region
      %115 = dma.done [#allocation10], 512
    $region65: #{tpu_custom_call.1} parent=1 // pred_fallthru
      _
    %v116 = vld [vmem:[#allocation4] sm:$0x3]
    %v117 = vld [vmem:[#allocation4 + $0x2] sm:$0x3]
    %v118 = vld [vmem:[#allocation4 + $0x4] sm:$0x3]
    %v119 = vld [vmem:[#allocation4 + $0x6] sm:$0x3]
    %v120 = vld [vmem:[#allocation4 + $0x8] sm:$0x3]
    %v121 = vld [vmem:[#allocation4 + $0xa] sm:$0x3]
    %v122 = vld [vmem:[#allocation4 + $0xc] sm:$0x3]
    %v123 = vld [vmem:[#allocation4 + $0xe] sm:$0x3]
    %132 = vst [vmem:[#allocation1] ss:$4 sm:$0xff] %v116
    %s133 = scalar_lea.vmem [#allocation1], 1
    %134 = vst [vmem:[%s133] ss:$4 sm:$0xff] %v117
    %s135 = scalar_lea.vmem [#allocation1], 2
    %136 = vst [vmem:[%s135] ss:$4 sm:$0xff] %v118
    %s137 = scalar_lea.vmem [#allocation1], 3
    %138 = vst [vmem:[%s137] ss:$4 sm:$0xff] %v119
    %s139 = scalar_lea.vmem [#allocation1], 32
    %140 = vst [vmem:[%s139] ss:$4 sm:$0xff] %v120
    %s141 = scalar_lea.vmem [#allocation1], 33
    %142 = vst [vmem:[%s141] ss:$4 sm:$0xff] %v121
    %s143 = scalar_lea.vmem [#allocation1], 34
    %144 = vst [vmem:[%s143] ss:$4 sm:$0xff] %v122
    %s145 = scalar_lea.vmem [#allocation1], 35
    %146 = vst [vmem:[%s145] ss:$4 sm:$0xff] %v123
    %v147 = vld.sshfl [vmem:[#allocation1] sm:$0xff pattern:$0x73625140]
    %v148 = vld.sshfl [vmem:[#allocation1 + $0x20] sm:$0xff pattern:$0x73625140]
    %vm151 = vcmask 261120
    %v152 = vsel %vm151, %v147, 0.0
    %153 = vadd.xlane.f32.xlu0 %v152
    %v154 = vpop.xlane.xlu0 %153
    %v155 = vsel %vm151, %v148, 0.0
    %156 = vadd.xlane.f32.xlu0 %v155
    %v157 = vpop.xlane.xlu0 %156
    %v158 = vrcp.pop 32.0
    %v159 = vmul.f32 32.0, %v158
    %v160 = vsub.f32 1.0, %v159
    %v161 = vmul.f32 %v158, %v160
    %v162 = vadd.f32 %v158, %v161
    %vm163 = vweird.f32 %v158
    %v164 = vsel %vm163, %v158, %v162
    %v165 = vmul.f32 %v154, %v164
    %v166 = vmul.f32 %v157, %v164
    %v170 = vunpack.c.l.s4 269488144
    %v171 = vunpack.c.0.s8 %v170
    %v172 = vperm.slane %v165, %v171
    %v174 = vunpack.c.l.s4 842150450
    %v175 = vunpack.c.0.s8 %v174
    %v176 = vperm.slane %v165, %v175
    %v178 = vunpack.c.l.s4 1414812756
    %v179 = vunpack.c.0.s8 %v178
    %v180 = vperm.slane %v165, %v179
    %v182 = vunpack.c.l.s4 1987475062
    %v183 = vunpack.c.0.s8 %v182
    %v184 = vperm.slane %v165, %v183
    %v186 = vunpack.c.l.s4 269488144
    %v187 = vunpack.c.0.s8 %v186
    %v188 = vperm.slane %v166, %v187
    %v190 = vunpack.c.l.s4 842150450
    %v191 = vunpack.c.0.s8 %v190
    %v192 = vperm.slane %v166, %v191
    %v194 = vunpack.c.l.s4 1414812756
    %v195 = vunpack.c.0.s8 %v194
    %v196 = vperm.slane %v166, %v195
    %v198 = vunpack.c.l.s4 1987475062
    %v199 = vunpack.c.0.s8 %v198
    %v200 = vperm.slane %v166, %v199
    %v209 = vsub.f32 %v116, %v172
    %v210 = vsub.f32 %v117, %v176
    %v211 = vsub.f32 %v118, %v180
    %v212 = vsub.f32 %v119, %v184
    %v213 = vsub.f32 %v120, %v188
    %v214 = vsub.f32 %v121, %v192
    %v215 = vsub.f32 %v122, %v196
    %v216 = vsub.f32 %v123, %v200
    %v217 = vmul.f32 %v209, %v209
    %v218 = vmul.f32 %v210, %v210
    %v219 = vmul.f32 %v211, %v211
    %v220 = vmul.f32 %v212, %v212
    %v221 = vmul.f32 %v213, %v213
    %v222 = vmul.f32 %v214, %v214
    %v223 = vmul.f32 %v215, %v215
    %v224 = vmul.f32 %v216, %v216
    %233 = vst [vmem:[#allocation1] ss:$4 sm:$0xff] %v217
    %s234 = scalar_lea.vmem [#allocation1], 1
    %235 = vst [vmem:[%s234] ss:$4 sm:$0xff] %v218
    %s236 = scalar_lea.vmem [#allocation1], 2
    %237 = vst [vmem:[%s236] ss:$4 sm:$0xff] %v219
    %s238 = scalar_lea.vmem [#allocation1], 3
    %239 = vst [vmem:[%s238] ss:$4 sm:$0xff] %v220
    %s240 = scalar_lea.vmem [#allocation1], 32
    %241 = vst [vmem:[%s240] ss:$4 sm:$0xff] %v221
    %s242 = scalar_lea.vmem [#allocation1], 33
    %243 = vst [vmem:[%s242] ss:$4 sm:$0xff] %v222
    %s244 = scalar_lea.vmem [#allocation1], 34
    %245 = vst [vmem:[%s244] ss:$4 sm:$0xff] %v223
    %s246 = scalar_lea.vmem [#allocation1], 35
    %247 = vst [vmem:[%s246] ss:$4 sm:$0xff] %v224
    %v248 = vld.sshfl [vmem:[#allocation1] sm:$0xff pattern:$0x73625140]
    %v249 = vld.sshfl [vmem:[#allocation1 + $0x20] sm:$0xff pattern:$0x73625140]
    %v252 = vsel %vm151, %v248, 0.0
    %253 = vadd.xlane.f32.xlu0 %v252
    %v254 = vpop.xlane.xlu0 %253
    %v255 = vsel %vm151, %v249, 0.0
    %256 = vadd.xlane.f32.xlu0 %v255
    %v257 = vpop.xlane.xlu0 %256
    %v258 = vmul.f32 %v254, %v164
    %v259 = vmul.f32 %v257, %v164
    %v260 = vadd.f32 %v258, 1e-05
    %v261 = vadd.f32 %v259, 1e-05
    %v262 = vrsqrt.pop %v260
    %v263 = vmul.f32 %v262, %v260
    %v264 = vmul.f32 %v263, %v262
    %v265 = vmul.f32 0.5, %v264
    %v266 = vsub.f32 1.5, %v265
    %v267 = vmul.f32 %v262, %v266
    %vm268 = vweird.f32 %v260
    %vm269 = vweird.f32 %v262
    %vm270 = vmor %vm268, %vm269
    %v271 = vsel %vm270, %v262, %v267
    %v272 = vrsqrt.pop %v261
    %v273 = vmul.f32 %v272, %v261
    %v274 = vmul.f32 %v273, %v272
    %v275 = vmul.f32 0.5, %v274
    %v276 = vsub.f32 1.5, %v275
    %v277 = vmul.f32 %v272, %v276
    %vm278 = vweird.f32 %v261
    %vm279 = vweird.f32 %v272
    %vm280 = vmor %vm278, %vm279
    %v281 = vsel %vm280, %v272, %v277
    %v285 = vunpack.c.l.s4 269488144
    %v286 = vunpack.c.0.s8 %v285
    %v287 = vperm.slane %v271, %v286
    %v289 = vunpack.c.l.s4 842150450
    %v290 = vunpack.c.0.s8 %v289
    %v291 = vperm.slane %v271, %v290
    %v293 = vunpack.c.l.s4 1414812756
    %v294 = vunpack.c.0.s8 %v293
    %v295 = vperm.slane %v271, %v294
    %v297 = vunpack.c.l.s4 1987475062
    %v298 = vunpack.c.0.s8 %v297
    %v299 = vperm.slane %v271, %v298
    %v301 = vunpack.c.l.s4 269488144
    %v302 = vunpack.c.0.s8 %v301
    %v303 = vperm.slane %v281, %v302
    %v305 = vunpack.c.l.s4 842150450
    %v306 = vunpack.c.0.s8 %v305
    %v307 = vperm.slane %v281, %v306
    %v309 = vunpack.c.l.s4 1414812756
    %v310 = vunpack.c.0.s8 %v309
    %v311 = vperm.slane %v281, %v310
    %v313 = vunpack.c.l.s4 1987475062
    %v314 = vunpack.c.0.s8 %v313
    %v315 = vperm.slane %v281, %v314
    %v324 = vmul.f32 %v209, %v287
    %v325 = vmul.f32 %v210, %v291
    %v326 = vmul.f32 %v211, %v295
    %v327 = vmul.f32 %v212, %v299
    %v328 = vmul.f32 %v213, %v303
    %v329 = vmul.f32 %v214, %v307
    %v330 = vmul.f32 %v215, %v311
    %v331 = vmul.f32 %v216, %v315
    %v332 = vld [vmem:[%s1] sm:$0x1]
    %v334 = vperm.slane %v332, 0
    %v336 = vrot.slane %v334, 2
    %v337 = vrot.slane %v334, 4
    %v338 = vrot.slane %v334, 6
    %v342 = vmul.f32 %v324, %v334
    %v343 = vmul.f32 %v325, %v336
    %v344 = vmul.f32 %v326, %v337
    %v345 = vmul.f32 %v327, %v338
    %v346 = vmul.f32 %v328, %v334
    %v347 = vmul.f32 %v329, %v336
    %v348 = vmul.f32 %v330, %v337
    %v349 = vmul.f32 %v331, %v338
    %v350 = vld [vmem:[#allocation6] sm:$0x1]
    %v352 = vperm.slane %v350, 0
    %v354 = vrot.slane %v352, 2
    %v355 = vrot.slane %v352, 4
    %v356 = vrot.slane %v352, 6
    %v360 = vadd.f32 %v342, %v352
    %v361 = vadd.f32 %v343, %v354
    %v362 = vadd.f32 %v344, %v355
    %v363 = vadd.f32 %v345, %v356
    %v364 = vadd.f32 %v346, %v352
    %v365 = vadd.f32 %v347, %v354
    %v366 = vadd.f32 %v348, %v355
    %v367 = vadd.f32 %v349, %v356
    %v368 = vld [vmem:[#allocation8] sm:$0xff]
    %v369 = vld [vmem:[#allocation8 + $0x8] sm:$0xff]
    %v370 = vld [vmem:[#allocation8 + $0x10] sm:$0xff]
    %v371 = vld [vmem:[#allocation8 + $0x18] sm:$0xff]
    %v372 = vld [vmem:[%s4] sm:$0x1]
    %v374 = vperm.slane %v372, 0
    %384 = vst [vmem:[#allocation1] ss:$4 sm:$0xff] %v360
    %s385 = scalar_lea.vmem [#allocation1], 1
    %386 = vst [vmem:[%s385] ss:$4 sm:$0xff] %v361
    %s387 = scalar_lea.vmem [#allocation1], 2
    %388 = vst [vmem:[%s387] ss:$4 sm:$0xff] %v362
    %s389 = scalar_lea.vmem [#allocation1], 3
    %390 = vst [vmem:[%s389] ss:$4 sm:$0xff] %v363
    %s391 = scalar_lea.vmem [#allocation1], 32
    %392 = vst [vmem:[%s391] ss:$4 sm:$0xff] %v364
    %s393 = scalar_lea.vmem [#allocation1], 33
    %394 = vst [vmem:[%s393] ss:$4 sm:$0xff] %v365
    %s395 = scalar_lea.vmem [#allocation1], 34
    %396 = vst [vmem:[%s395] ss:$4 sm:$0xff] %v366
    %s397 = scalar_lea.vmem [#allocation1], 35
    %398 = vst [vmem:[%s397] ss:$4 sm:$0xff] %v367
    %v399 = vld.sshfl [vmem:[#allocation1] sm:$0xff pattern:$0x73625140]
    %v400 = vld.sshfl [vmem:[#allocation1 + $0x20] sm:$0xff pattern:$0x73625140]
    %v401 = vsel %vm151, %v399, 0
    %v403 = vsel %vm151, %v400, 0
    %405 = vmatpush.msra.mxu0 0.0
    %406 = vmatpush.msra.mxu0 0.0
    %407 = vmatpush.msra.mxu0 0.0
    %408 = vmatpush.msra.mxu0 0.0
    %409 = vmatpush.msra.mxu0 0.0
    %410 = vmatpush.msra.mxu0 0.0
    %411 = vmatpush.msra.mxu0 0.0
    %412 = vmatpush.msra.mxu0 0.0
    %413 = vmatpush.msra.mxu0 0.0
    %414 = vmatpush.msra.mxu0 0.0
    %415 = vmatpush.msra.mxu0 0.0
    %416 = vmatpush.msra.mxu0 0.0
    %417 = vmatpush.msra.mxu0 %v371
    %418 = vmatpush.msra.mxu0 %v370
    %419 = vmatpush.msra.mxu0 %v369
    %420 = vmatpush.msra.mxu0 %v368
    %421 = vmatmul.f32.gmra.mxu0 %v401
    %v422 = vpop.f32.mrf.mxu0
    %v423 = vadd.f32 %v374, %v422
    %424 = vmatmul.f32.gmra.mxu0 %v403
    %v425 = vpop.f32.mrf.mxu0
    %v426 = vadd.f32 %v374, %v425
    %427 = vdwg.mxu0
    %v430 = vrot.slane %v423, 2
    %v431 = vrot.slane %v423, 4
    %v432 = vrot.slane %v423, 6
    %v433 = vrot.slane %v426, 2
    %v434 = vrot.slane %v426, 4
    %v435 = vrot.slane %v426, 6
    %vm442 = vcmask 779264
    %443 = vst.msk [vmem:[#allocation2] sm:$0x3] %vm442, %v423
    %444 = vst.msk [vmem:[#allocation2 + $0x2] sm:$0x3] %vm442, %v430
    %445 = vst.msk [vmem:[#allocation2 + $0x4] sm:$0x3] %vm442, %v431
    %446 = vst.msk [vmem:[#allocation2 + $0x6] sm:$0x3] %vm442, %v432
    %447 = vst.msk [vmem:[#allocation2 + $0x8] sm:$0x3] %vm442, %v426
    %448 = vst.msk [vmem:[#allocation2 + $0xa] sm:$0x3] %vm442, %v433
    %449 = vst.msk [vmem:[#allocation2 + $0xc] sm:$0x3] %vm442, %v434
    %450 = vst.msk [vmem:[#allocation2 + $0xe] sm:$0x3] %vm442, %v435
    %v451 = vld [vmem:[#allocation9] sm:$0xff]
    %v452 = vld [vmem:[#allocation9 + $0x8] sm:$0xff]
    %v453 = vld [vmem:[#allocation9 + $0x10] sm:$0xff]
    %v454 = vld [vmem:[#allocation9 + $0x18] sm:$0xff]
    %v455 = vld [vmem:[#allocation9 + $0x20] sm:$0xff]
    %v456 = vld [vmem:[#allocation9 + $0x28] sm:$0xff]
    %v457 = vld [vmem:[#allocation9 + $0x30] sm:$0xff]
    %v458 = vld [vmem:[#allocation9 + $0x38] sm:$0xff]
    %v459 = vld [vmem:[#allocation9 + $0x40] sm:$0xff]
    %v460 = vld [vmem:[#allocation9 + $0x48] sm:$0xff]
    %v461 = vld [vmem:[#allocation9 + $0x50] sm:$0xff]
    %v462 = vld [vmem:[#allocation9 + $0x58] sm:$0xff]
    %v463 = vld [vmem:[#allocation9 + $0x60] sm:$0xff]
    %v464 = vld [vmem:[#allocation9 + $0x68] sm:$0xff]
    %v465 = vld [vmem:[#allocation9 + $0x70] sm:$0xff]
    %v466 = vld [vmem:[#allocation9 + $0x78] sm:$0xff]
    %v467 = vld [vmem:[%s6] sm:$0x3]
    %v468 = vld [vmem:[#allocation11] sm:$0xff]
    %v469 = vld [vmem:[#allocation11 + $0x8] sm:$0xff]
    %v470 = vld [vmem:[#allocation11 + $0x10] sm:$0xff]
    %v471 = vld [vmem:[#allocation11 + $0x18] sm:$0xff]
    %v472 = vld [vmem:[%s8] sm:$0x1]
    %v474 = vperm.slane %v467, 0
    %v475 = vperm.slane %v467, 1
    %vm478 = vcmask 523264
    %v480 = vsel %vm478, 0.0, 0
    %482 = vmatpush.msra.mxu0 0.0
    %483 = vmatpush.msra.mxu0 0.0
    %484 = vmatpush.msra.mxu0 0.0
    %485 = vmatpush.msra.mxu0 0.0
    %486 = vmatpush.msra.mxu0 0.0
    %487 = vmatpush.msra.mxu0 0.0
    %488 = vmatpush.msra.mxu0 0.0
    %489 = vmatpush.msra.mxu0 0.0
    %490 = vmatpush.msra.mxu0 %v465
    %491 = vmatpush.msra.mxu0 %v463
    %492 = vmatpush.msra.mxu0 %v461
    %493 = vmatpush.msra.mxu0 %v459
    %494 = vmatpush.msra.mxu0 %v457
    %495 = vmatpush.msra.mxu0 %v455
    %496 = vmatpush.msra.mxu0 %v453
    %497 = vmatpush.msra.mxu0 %v451
    %498 = vmatmul.f32.gmra.mxu0 %v480
    %v499 = vpop.f32.mrf.mxu0
    %v500 = vadd.f32 %v474, %v499
    %501 = vdwg.mxu0
    %502 = vmatpush.msra.mxu0 0.0
    %503 = vmatpush.msra.mxu0 0.0
    %504 = vmatpush.msra.mxu0 0.0
    %505 = vmatpush.msra.mxu0 0.0
    %506 = vmatpush.msra.mxu0 0.0
    %507 = vmatpush.msra.mxu0 0.0
    %508 = vmatpush.msra.mxu0 0.0
    %509 = vmatpush.msra.mxu0 0.0
    %510 = vmatpush.msra.mxu0 %v466
    %511 = vmatpush.msra.mxu0 %v464
    %512 = vmatpush.msra.mxu0 %v462
    %513 = vmatpush.msra.mxu0 %v460
    %514 = vmatpush.msra.mxu0 %v458
    %515 = vmatpush.msra.mxu0 %v456
    %516 = vmatpush.msra.mxu0 %v454
    %517 = vmatpush.msra.mxu0 %v452
    %518 = vmatmul.f32.gmra.mxu0 %v480
    %v519 = vpop.f32.mrf.mxu0
    %v520 = vadd.f32 %v475, %v519
    %521 = vdwg.mxu0
    %v522 = vld [vmem:[#allocation2] sm:$0x3]
    %v523 = vadd.f32 %v522, %v500
    %v524 = vxor.u32 %v523, 2147483648
    %v525 = vmul.f32 %v524, 1.442695
    %v526 = vpow.pop %v525
    %v527 = vadd.f32 %v526, 1.0
    %v528 = vrcp.pop %v527
    %v529 = vmul.f32 %v527, %v528
    %v530 = vsub.f32 1.0, %v529
    %v531 = vmul.f32 %v528, %v530
    %v532 = vadd.f32 %v528, %v531
    %vm533 = vweird.f32 %v527
    %vm534 = vweird.f32 %v528
    %vm535 = vmor %vm533, %vm534
    %v536 = vsel %vm535, %v528, %v532
    %v537 = vand.u32 2147483647, %v527
    %vm538 = vcmp.eq.f32.partialorder %v537, 8.507059e+37
    %v539 = vand.u32 %v527, 2147483648
    %v540 = vor.u32 1.1754944e-38, %v539
    %v541 = vsel %vm538, %v540, %v536
    %v542 = vmul.f32 1.0, %v541
    %544 = vrot.lane.b32.xlu0 %v500, 64
    %v545 = vpop.permute.xlu0 %544
    %v547 = vmul.f32 %v542, %v545
    %549 = vrot.lane.b32.xlu0 %v547, 64
    %v550 = vpop.permute.xlu0 %549
    %v552 = vadd.f32 %v522, %v550
    %v553 = vtanh.pop %v552
    %v554 = vsub.f32 0.0, %v553
    %556 = vrot.lane.b32.xlu0 %v554, 96
    %v557 = vpop.permute.xlu0 %556
    %v559 = vmul.f32 %v542, %v557
    %561 = vrot.lane.b32.xlu0 %v559, 32
    %v562 = vpop.permute.xlu0 %561
    %v564 = vadd.f32 %v553, %v562
    %v566 = vperm.slane %v472, 0
    %569 = vrot.lane.b32.xlu0 %v564, 64
    %v570 = vpop.permute.xlu0 %569
    %v571 = vsel %vm151, %v570, 0
    %573 = vmatpush.msra.mxu0 0.0
    %574 = vmatpush.msra.mxu0 0.0
    %575 = vmatpush.msra.mxu0 0.0
    %576 = vmatpush.msra.mxu0 0.0
    %577 = vmatpush.msra.mxu0 0.0
    %578 = vmatpush.msra.mxu0 0.0
    %579 = vmatpush.msra.mxu0 0.0
    %580 = vmatpush.msra.mxu0 0.0
    %581 = vmatpush.msra.mxu0 0.0
    %582 = vmatpush.msra.mxu0 0.0
    %583 = vmatpush.msra.mxu0 0.0
    %584 = vmatpush.msra.mxu0 0.0
    %585 = vmatpush.msra.mxu0 %v471
    %586 = vmatpush.msra.mxu0 %v470
    %587 = vmatpush.msra.mxu0 %v469
    %588 = vmatpush.msra.mxu0 %v468
    %589 = vmatmul.f32.gmra.mxu0 %v571
    %v590 = vpop.f32.mrf.mxu0
    %v591 = vadd.f32 %v566, %v590
    %592 = vdwg.mxu0
    %594 = vrot.lane.b32.xlu0 %v500, 32
    %v595 = vpop.permute.xlu0 %594
    %596 = vrot.lane.b32.xlu0 %v520, 32
    %v597 = vpop.permute.xlu0 %596
    %v598 = vsel %vm151, %v595, %v597
    %v600 = vadd.f32 %v591, %v598
    %v601 = vxor.u32 %v600, 2147483648
    %v602 = vmul.f32 %v601, 1.442695
    %v603 = vpow.pop %v602
    %v604 = vadd.f32 %v603, 1.0
    %v605 = vrcp.pop %v604
    %v606 = vmul.f32 %v604, %v605
    %v607 = vsub.f32 1.0, %v606
    %v608 = vmul.f32 %v605, %v607
    %v609 = vadd.f32 %v605, %v608
    %vm610 = vweird.f32 %v604
    %vm611 = vweird.f32 %v605
    %vm612 = vmor %vm610, %vm611
    %v613 = vsel %vm612, %v605, %v609
    %v614 = vand.u32 2147483647, %v604
    %vm615 = vcmp.eq.f32.partialorder %v614, 8.507059e+37
    %v616 = vand.u32 %v604, 2147483648
    %v617 = vor.u32 1.1754944e-38, %v616
    %v618 = vsel %vm615, %v617, %v613
    %v619 = vmul.f32 1.0, %v618
    %620 = vrot.lane.b32.xlu0 %v520, 96
    %v621 = vpop.permute.xlu0 %620
    %v623 = vmul.f32 %v619, %v621
    %625 = vrot.lane.b32.xlu0 %v623, 64
    %v626 = vpop.permute.xlu0 %625
    %v628 = vadd.f32 %v591, %v626
    %v629 = vtanh.pop %v628
    %v630 = vsub.f32 0.0, %v629
    %632 = vrot.lane.b32.xlu0 %v630, 96
    %v633 = vpop.permute.xlu0 %632
    %v635 = vmul.f32 %v619, %v633
    %637 = vrot.lane.b32.xlu0 %v635, 32
    %v638 = vpop.permute.xlu0 %637
    %v640 = vadd.f32 %v629, %v638
    %643 = vrot.lane.b32.xlu0 %v640, 96
    %v644 = vpop.permute.xlu0 %643
    %v646 = vsel %vm151, %v570, %v644
    %v648 = vsel %vm478, %v646, 0
    %650 = vmatpush.msra.mxu0 0.0
    %651 = vmatpush.msra.mxu0 0.0
    %652 = vmatpush.msra.mxu0 0.0
    %653 = vmatpush.msra.mxu0 0.0
    %654 = vmatpush.msra.mxu0 0.0
    %655 = vmatpush.msra.mxu0 0.0
    %656 = vmatpush.msra.mxu0 0.0
    %657 = vmatpush.msra.mxu0 0.0
    %658 = vmatpush.msra.mxu0 %v465
    %659 = vmatpush.msra.mxu0 %v463
    %660 = vmatpush.msra.mxu0 %v461
    %661 = vmatpush.msra.mxu0 %v459
    %662 = vmatpush.msra.mxu0 %v457
    %663 = vmatpush.msra.mxu0 %v455
    %664 = vmatpush.msra.mxu0 %v453
    %665 = vmatpush.msra.mxu0 %v451
    %666 = vmatmul.f32.gmra.mxu0 %v648
    %v667 = vpop.f32.mrf.mxu0
    %v668 = vadd.f32 %v474, %v667
    %669 = vdwg.mxu0
    %670 = vmatpush.msra.mxu0 0.0
    %671 = vmatpush.msra.mxu0 0.0
    %672 = vmatpush.msra.mxu0 0.0
    %673 = vmatpush.msra.mxu0 0.0
    %674 = vmatpush.msra.mxu0 0.0
    %675 = vmatpush.msra.mxu0 0.0
    %676 = vmatpush.msra.mxu0 0.0
    %677 = vmatpush.msra.mxu0 0.0
    %678 = vmatpush.msra.mxu0 %v466
    %679 = vmatpush.msra.mxu0 %v464
    %680 = vmatpush.msra.mxu0 %v462
    %681 = vmatpush.msra.mxu0 %v460
    %682 = vmatpush.msra.mxu0 %v458
    %683 = vmatpush.msra.mxu0 %v456
    %684 = vmatpush.msra.mxu0 %v454
    %685 = vmatpush.msra.mxu0 %v452
    %686 = vmatmul.f32.gmra.mxu0 %v648
    %v687 = vpop.f32.mrf.mxu0
    %v688 = vadd.f32 %v475, %v687
    %689 = vdwg.mxu0
    %s690 = scalar_lea.vmem [#allocation2], 2
    %v691 = vld [vmem:[%s690] sm:$0x3]
    %v692 = vadd.f32 %v691, %v668
    %v693 = vxor.u32 %v692, 2147483648
    %v694 = vmul.f32 %v693, 1.442695
    %v695 = vpow.pop %v694
    %v696 = vadd.f32 %v695, 1.0
    %v697 = vrcp.pop %v696
    %v698 = vmul.f32 %v696, %v697
    %v699 = vsub.f32 1.0, %v698
    %v700 = vmul.f32 %v697, %v699
    %v701 = vadd.f32 %v697, %v700
    %vm702 = vweird.f32 %v696
    %vm703 = vweird.f32 %v697
    %vm704 = vmor %vm702, %vm703
    %v705 = vsel %vm704, %v697, %v701
    %v706 = vand.u32 2147483647, %v696
    %vm707 = vcmp.eq.f32.partialorder %v706, 8.507059e+37
    %v708 = vand.u32 %v696, 2147483648
    %v709 = vor.u32 1.1754944e-38, %v708
    %v710 = vsel %vm707, %v709, %v705
    %v711 = vmul.f32 1.0, %v710
    %713 = vrot.lane.b32.xlu0 %v668, 64
    %v714 = vpop.permute.xlu0 %713
    %v716 = vmul.f32 %v711, %v714
    %718 = vrot.lane.b32.xlu0 %v716, 64
    %v719 = vpop.permute.xlu0 %718
    %v721 = vadd.f32 %v691, %v719
    %v722 = vtanh.pop %v721
    %v723 = vsub.f32 %v564, %v722
    %725 = vrot.lane.b32.xlu0 %v723, 96
    %v726 = vpop.permute.xlu0 %725
    %v728 = vmul.f32 %v711, %v726
    %730 = vrot.lane.b32.xlu0 %v728, 32
    %v731 = vpop.permute.xlu0 %730
    %v733 = vadd.f32 %v722, %v731
    %735 = vrot.lane.b32.xlu0 %v733, 64
    %v736 = vpop.permute.xlu0 %735
    %v737 = vsel %vm151, %v736, 0
    %739 = vmatpush.msra.mxu0 0.0
    %740 = vmatpush.msra.mxu0 0.0
    %741 = vmatpush.msra.mxu0 0.0
    %742 = vmatpush.msra.mxu0 0.0
    %743 = vmatpush.msra.mxu0 0.0
    %744 = vmatpush.msra.mxu0 0.0
    %745 = vmatpush.msra.mxu0 0.0
    %746 = vmatpush.msra.mxu0 0.0
    %747 = vmatpush.msra.mxu0 0.0
    %748 = vmatpush.msra.mxu0 0.0
    %749 = vmatpush.msra.mxu0 0.0
    %750 = vmatpush.msra.mxu0 0.0
    %751 = vmatpush.msra.mxu0 %v471
    %752 = vmatpush.msra.mxu0 %v470
    %753 = vmatpush.msra.mxu0 %v469
    %754 = vmatpush.msra.mxu0 %v468
    %755 = vmatmul.f32.gmra.mxu0 %v737
    %v756 = vpop.f32.mrf.mxu0
    %v757 = vadd.f32 %v566, %v756
    %758 = vdwg.mxu0
    %760 = vrot.lane.b32.xlu0 %v668, 32
    %v761 = vpop.permute.xlu0 %760
    %762 = vrot.lane.b32.xlu0 %v688, 32
    %v763 = vpop.permute.xlu0 %762
    %v764 = vsel %vm151, %v761, %v763
    %v766 = vadd.f32 %v757, %v764
    %v767 = vxor.u32 %v766, 2147483648
    %v768 = vmul.f32 %v767, 1.442695
    %v769 = vpow.pop %v768
    %v770 = vadd.f32 %v769, 1.0
    %v771 = vrcp.pop %v770
    %v772 = vmul.f32 %v770, %v771
    %v773 = vsub.f32 1.0, %v772
    %v774 = vmul.f32 %v771, %v773
    %v775 = vadd.f32 %v771, %v774
    %vm776 = vweird.f32 %v770
    %vm777 = vweird.f32 %v771
    %vm778 = vmor %vm776, %vm777
    %v779 = vsel %vm778, %v771, %v775
    %v780 = vand.u32 2147483647, %v770
    %vm781 = vcmp.eq.f32.partialorder %v780, 8.507059e+37
    %v782 = vand.u32 %v770, 2147483648
    %v783 = vor.u32 1.1754944e-38, %v782
    %v784 = vsel %vm781, %v783, %v779
    %v785 = vmul.f32 1.0, %v784
    %786 = vrot.lane.b32.xlu0 %v688, 96
    %v787 = vpop.permute.xlu0 %786
    %v789 = vmul.f32 %v785, %v787
    %791 = vrot.lane.b32.xlu0 %v789, 64
    %v792 = vpop.permute.xlu0 %791
    %v794 = vadd.f32 %v757, %v792
    %v795 = vtanh.pop %v794
    %v796 = vsub.f32 %v640, %v795
    %798 = vrot.lane.b32.xlu0 %v796, 96
    %v799 = vpop.permute.xlu0 %798
    %v801 = vmul.f32 %v785, %v799
    %803 = vrot.lane.b32.xlu0 %v801, 32
    %v804 = vpop.permute.xlu0 %803
    %v806 = vadd.f32 %v795, %v804
    %809 = vrot.lane.b32.xlu0 %v806, 96
    %v810 = vpop.permute.xlu0 %809
    %v812 = vsel %vm151, %v736, %v810
    %v814 = vsel %vm478, %v812, 0
    %816 = vmatpush.msra.mxu0 0.0
    %817 = vmatpush.msra.mxu0 0.0
    %818 = vmatpush.msra.mxu0 0.0
    %819 = vmatpush.msra.mxu0 0.0
    %820 = vmatpush.msra.mxu0 0.0
    %821 = vmatpush.msra.mxu0 0.0
    %822 = vmatpush.msra.mxu0 0.0
    %823 = vmatpush.msra.mxu0 0.0
    %824 = vmatpush.msra.mxu0 %v465
    %825 = vmatpush.msra.mxu0 %v463
    %826 = vmatpush.msra.mxu0 %v461
    %827 = vmatpush.msra.mxu0 %v459
    %828 = vmatpush.msra.mxu0 %v457
    %829 = vmatpush.msra.mxu0 %v455
    %830 = vmatpush.msra.mxu0 %v453
    %831 = vmatpush.msra.mxu0 %v451
    %832 = vmatmul.f32.gmra.mxu0 %v814
    %v833 = vpop.f32.mrf.mxu0
    %v834 = vadd.f32 %v474, %v833
    %835 = vdwg.mxu0
    %836 = vmatpush.msra.mxu0 0.0
    %837 = vmatpush.msra.mxu0 0.0
    %838 = vmatpush.msra.mxu0 0.0
    %839 = vmatpush.msra.mxu0 0.0
    %840 = vmatpush.msra.mxu0 0.0
    %841 = vmatpush.msra.mxu0 0.0
    %842 = vmatpush.msra.mxu0 0.0
    %843 = vmatpush.msra.mxu0 0.0
    %844 = vmatpush.msra.mxu0 %v466
    %845 = vmatpush.msra.mxu0 %v464
    %846 = vmatpush.msra.mxu0 %v462
    %847 = vmatpush.msra.mxu0 %v460
    %848 = vmatpush.msra.mxu0 %v458
    %849 = vmatpush.msra.mxu0 %v456
    %850 = vmatpush.msra.mxu0 %v454
    %851 = vmatpush.msra.mxu0 %v452
    %852 = vmatmul.f32.gmra.mxu0 %v814
    %v853 = vpop.f32.mrf.mxu0
    %v854 = vadd.f32 %v475, %v853
    %855 = vdwg.mxu0
    %s856 = scalar_lea.vmem [#allocation2], 4
    %v857 = vld [vmem:[%s856] sm:$0x3]
    %v858 = vadd.f32 %v857, %v834
    %v859 = vxor.u32 %v858, 2147483648
    %v860 = vmul.f32 %v859, 1.442695
    %v861 = vpow.pop %v860
    %v862 = vadd.f32 %v861, 1.0
    %v863 = vrcp.pop %v862
    %v864 = vmul.f32 %v862, %v863
    %v865 = vsub.f32 1.0, %v864
    %v866 = vmul.f32 %v863, %v865
    %v867 = vadd.f32 %v863, %v866
    %vm868 = vweird.f32 %v862
    %vm869 = vweird.f32 %v863
    %vm870 = vmor %vm868, %vm869
    %v871 = vsel %vm870, %v863, %v867
    %v872 = vand.u32 2147483647, %v862
    %vm873 = vcmp.eq.f32.partialorder %v872, 8.507059e+37
    %v874 = vand.u32 %v862, 2147483648
    %v875 = vor.u32 1.1754944e-38, %v874
    %v876 = vsel %vm873, %v875, %v871
    %v877 = vmul.f32 1.0, %v876
    %879 = vrot.lane.b32.xlu0 %v834, 64
    %v880 = vpop.permute.xlu0 %879
    %v882 = vmul.f32 %v877, %v880
    %884 = vrot.lane.b32.xlu0 %v882, 64
    %v885 = vpop.permute.xlu0 %884
    %v887 = vadd.f32 %v857, %v885
    %v888 = vtanh.pop %v887
    %v889 = vsub.f32 %v733, %v888
    %891 = vrot.lane.b32.xlu0 %v889, 96
    %v892 = vpop.permute.xlu0 %891
    %v894 = vmul.f32 %v877, %v892
    %896 = vrot.lane.b32.xlu0 %v894, 32
    %v897 = vpop.permute.xlu0 %896
    %v899 = vadd.f32 %v888, %v897
    %901 = vrot.lane.b32.xlu0 %v899, 64
    %v902 = vpop.permute.xlu0 %901
    %v903 = vsel %vm151, %v902, 0
    %905 = vmatpush.msra.mxu0 0.0
    %906 = vmatpush.msra.mxu0 0.0
    %907 = vmatpush.msra.mxu0 0.0
    %908 = vmatpush.msra.mxu0 0.0
    %909 = vmatpush.msra.mxu0 0.0
    %910 = vmatpush.msra.mxu0 0.0
    %911 = vmatpush.msra.mxu0 0.0
    %912 = vmatpush.msra.mxu0 0.0
    %913 = vmatpush.msra.mxu0 0.0
    %914 = vmatpush.msra.mxu0 0.0
    %915 = vmatpush.msra.mxu0 0.0
    %916 = vmatpush.msra.mxu0 0.0
    %917 = vmatpush.msra.mxu0 %v471
    %918 = vmatpush.msra.mxu0 %v470
    %919 = vmatpush.msra.mxu0 %v469
    %920 = vmatpush.msra.mxu0 %v468
    %921 = vmatmul.f32.gmra.mxu0 %v903
    %v922 = vpop.f32.mrf.mxu0
    %v923 = vadd.f32 %v566, %v922
    %924 = vdwg.mxu0
    %926 = vrot.lane.b32.xlu0 %v834, 32
    %v927 = vpop.permute.xlu0 %926
    %928 = vrot.lane.b32.xlu0 %v854, 32
    %v929 = vpop.permute.xlu0 %928
    %v930 = vsel %vm151, %v927, %v929
    %v932 = vadd.f32 %v923, %v930
    %v933 = vxor.u32 %v932, 2147483648
    %v934 = vmul.f32 %v933, 1.442695
    %v935 = vpow.pop %v934
    %v936 = vadd.f32 %v935, 1.0
    %v937 = vrcp.pop %v936
    %v938 = vmul.f32 %v936, %v937
    %v939 = vsub.f32 1.0, %v938
    %v940 = vmul.f32 %v937, %v939
    %v941 = vadd.f32 %v937, %v940
    %vm942 = vweird.f32 %v936
    %vm943 = vweird.f32 %v937
    %vm944 = vmor %vm942, %vm943
    %v945 = vsel %vm944, %v937, %v941
    %v946 = vand.u32 2147483647, %v936
    %vm947 = vcmp.eq.f32.partialorder %v946, 8.507059e+37
    %v948 = vand.u32 %v936, 2147483648
    %v949 = vor.u32 1.1754944e-38, %v948
    %v950 = vsel %vm947, %v949, %v945
    %v951 = vmul.f32 1.0, %v950
    %952 = vrot.lane.b32.xlu0 %v854, 96
    %v953 = vpop.permute.xlu0 %952
    %v955 = vmul.f32 %v951, %v953
    %957 = vrot.lane.b32.xlu0 %v955, 64
    %v958 = vpop.permute.xlu0 %957
    %v960 = vadd.f32 %v923, %v958
    %v961 = vtanh.pop %v960
    %v962 = vsub.f32 %v806, %v961
    %964 = vrot.lane.b32.xlu0 %v962, 96
    %v965 = vpop.permute.xlu0 %964
    %v967 = vmul.f32 %v951, %v965
    %969 = vrot.lane.b32.xlu0 %v967, 32
    %v970 = vpop.permute.xlu0 %969
    %v972 = vadd.f32 %v961, %v970
    %975 = vrot.lane.b32.xlu0 %v972, 96
    %v976 = vpop.permute.xlu0 %975
    %v978 = vsel %vm151, %v902, %v976
    %v980 = vsel %vm478, %v978, 0
    %982 = vmatpush.msra.mxu0 0.0
    %983 = vmatpush.msra.mxu0 0.0
    %984 = vmatpush.msra.mxu0 0.0
    %985 = vmatpush.msra.mxu0 0.0
    %986 = vmatpush.msra.mxu0 0.0
    %987 = vmatpush.msra.mxu0 0.0
    %988 = vmatpush.msra.mxu0 0.0
    %989 = vmatpush.msra.mxu0 0.0
    %990 = vmatpush.msra.mxu0 %v465
    %991 = vmatpush.msra.mxu0 %v463
    %992 = vmatpush.msra.mxu0 %v461
    %993 = vmatpush.msra.mxu0 %v459
    %994 = vmatpush.msra.mxu0 %v457
    %995 = vmatpush.msra.mxu0 %v455
    %996 = vmatpush.msra.mxu0 %v453
    %997 = vmatpush.msra.mxu0 %v451
    %998 = vmatmul.f32.gmra.mxu0 %v980
    %v999 = vpop.f32.mrf.mxu0
    %v1000 = vadd.f32 %v474, %v999
    %1001 = vdwg.mxu0
    %1002 = vmatpush.msra.mxu0 0.0
    %1003 = vmatpush.msra.mxu0 0.0
    %1004 = vmatpush.msra.mxu0 0.0
    %1005 = vmatpush.msra.mxu0 0.0
    %1006 = vmatpush.msra.mxu0 0.0
    %1007 = vmatpush.msra.mxu0 0.0
    %1008 = vmatpush.msra.mxu0 0.0
    %1009 = vmatpush.msra.mxu0 0.0
    %1010 = vmatpush.msra.mxu0 %v466
    %1011 = vmatpush.msra.mxu0 %v464
    %1012 = vmatpush.msra.mxu0 %v462
    %1013 = vmatpush.msra.mxu0 %v460
    %1014 = vmatpush.msra.mxu0 %v458
    %1015 = vmatpush.msra.mxu0 %v456
    %1016 = vmatpush.msra.mxu0 %v454
    %1017 = vmatpush.msra.mxu0 %v452
    %1018 = vmatmul.f32.gmra.mxu0 %v980
    %v1019 = vpop.f32.mrf.mxu0
    %v1020 = vadd.f32 %v475, %v1019
    %1021 = vdwg.mxu0
    %s1022 = scalar_lea.vmem [#allocation2], 6
    %v1023 = vld [vmem:[%s1022] sm:$0x3]
    %v1024 = vadd.f32 %v1023, %v1000
    %v1025 = vxor.u32 %v1024, 2147483648
    %v1026 = vmul.f32 %v1025, 1.442695
    %v1027 = vpow.pop %v1026
    %v1028 = vadd.f32 %v1027, 1.0
    %v1029 = vrcp.pop %v1028
    %v1030 = vmul.f32 %v1028, %v1029
    %v1031 = vsub.f32 1.0, %v1030
    %v1032 = vmul.f32 %v1029, %v1031
    %v1033 = vadd.f32 %v1029, %v1032
    %vm1034 = vweird.f32 %v1028
    %vm1035 = vweird.f32 %v1029
    %vm1036 = vmor %vm1034, %vm1035
    %v1037 = vsel %vm1036, %v1029, %v1033
    %v1038 = vand.u32 2147483647, %v1028
    %vm1039 = vcmp.eq.f32.partialorder %v1038, 8.507059e+37
    %v1040 = vand.u32 %v1028, 2147483648
    %v1041 = vor.u32 1.1754944e-38, %v1040
    %v1042 = vsel %vm1039, %v1041, %v1037
    %v1043 = vmul.f32 1.0, %v1042
    %1045 = vrot.lane.b32.xlu0 %v1000, 64
    %v1046 = vpop.permute.xlu0 %1045
    %v1048 = vmul.f32 %v1043, %v1046
    %1050 = vrot.lane.b32.xlu0 %v1048, 64
    %v1051 = vpop.permute.xlu0 %1050
    %v1053 = vadd.f32 %v1023, %v1051
    %v1054 = vtanh.pop %v1053
    %v1055 = vsub.f32 %v899, %v1054
    %1057 = vrot.lane.b32.xlu0 %v1055, 96
    %v1058 = vpop.permute.xlu0 %1057
    %v1060 = vmul.f32 %v1043, %v1058
    %1062 = vrot.lane.b32.xlu0 %v1060, 32
    %v1063 = vpop.permute.xlu0 %1062
    %v1065 = vadd.f32 %v1054, %v1063
    %1067 = vrot.lane.b32.xlu0 %v1065, 64
    %v1068 = vpop.permute.xlu0 %1067
    %v1069 = vsel %vm151, %v1068, 0
    %1071 = vmatpush.msra.mxu0 0.0
    %1072 = vmatpush.msra.mxu0 0.0
    %1073 = vmatpush.msra.mxu0 0.0
    %1074 = vmatpush.msra.mxu0 0.0
    %1075 = vmatpush.msra.mxu0 0.0
    %1076 = vmatpush.msra.mxu0 0.0
    %1077 = vmatpush.msra.mxu0 0.0
    %1078 = vmatpush.msra.mxu0 0.0
    %1079 = vmatpush.msra.mxu0 0.0
    %1080 = vmatpush.msra.mxu0 0.0
    %1081 = vmatpush.msra.mxu0 0.0
    %1082 = vmatpush.msra.mxu0 0.0
    %1083 = vmatpush.msra.mxu0 %v471
    %1084 = vmatpush.msra.mxu0 %v470
    %1085 = vmatpush.msra.mxu0 %v469
    %1086 = vmatpush.msra.mxu0 %v468
    %1087 = vmatmul.f32.gmra.mxu0 %v1069
    %v1088 = vpop.f32.mrf.mxu0
    %v1089 = vadd.f32 %v566, %v1088
    %1090 = vdwg.mxu0
    %1092 = vrot.lane.b32.xlu0 %v1000, 32
    %v1093 = vpop.permute.xlu0 %1092
    %1094 = vrot.lane.b32.xlu0 %v1020, 32
    %v1095 = vpop.permute.xlu0 %1094
    %v1096 = vsel %vm151, %v1093, %v1095
    %v1098 = vadd.f32 %v1089, %v1096
    %v1099 = vxor.u32 %v1098, 2147483648
    %v1100 = vmul.f32 %v1099, 1.442695
    %v1101 = vpow.pop %v1100
    %v1102 = vadd.f32 %v1101, 1.0
    %v1103 = vrcp.pop %v1102
    %v1104 = vmul.f32 %v1102, %v1103
    %v1105 = vsub.f32 1.0, %v1104
    %v1106 = vmul.f32 %v1103, %v1105
    %v1107 = vadd.f32 %v1103, %v1106
    %vm1108 = vweird.f32 %v1102
    %vm1109 = vweird.f32 %v1103
    %vm1110 = vmor %vm1108, %vm1109
    %v1111 = vsel %vm1110, %v1103, %v1107
    %v1112 = vand.u32 2147483647, %v1102
    %vm1113 = vcmp.eq.f32.partialorder %v1112, 8.507059e+37
    %v1114 = vand.u32 %v1102, 2147483648
    %v1115 = vor.u32 1.1754944e-38, %v1114
    %v1116 = vsel %vm1113, %v1115, %v1111
    %v1117 = vmul.f32 1.0, %v1116
    %1118 = vrot.lane.b32.xlu0 %v1020, 96
    %v1119 = vpop.permute.xlu0 %1118
    %v1121 = vmul.f32 %v1117, %v1119
    %1123 = vrot.lane.b32.xlu0 %v1121, 64
    %v1124 = vpop.permute.xlu0 %1123
    %v1126 = vadd.f32 %v1089, %v1124
    %v1127 = vtanh.pop %v1126
    %v1128 = vsub.f32 %v972, %v1127
    %1130 = vrot.lane.b32.xlu0 %v1128, 96
    %v1131 = vpop.permute.xlu0 %1130
    %v1133 = vmul.f32 %v1117, %v1131
    %1135 = vrot.lane.b32.xlu0 %v1133, 32
    %v1136 = vpop.permute.xlu0 %1135
    %v1138 = vadd.f32 %v1127, %v1136
    %1141 = vrot.lane.b32.xlu0 %v1138, 96
    %v1142 = vpop.permute.xlu0 %1141
    %v1144 = vsel %vm151, %v1068, %v1142
    %v1146 = vsel %vm478, %v1144, 0
    %1148 = vmatpush.msra.mxu0 0.0
    %1149 = vmatpush.msra.mxu0 0.0
    %1150 = vmatpush.msra.mxu0 0.0
    %1151 = vmatpush.msra.mxu0 0.0
    %1152 = vmatpush.msra.mxu0 0.0
    %1153 = vmatpush.msra.mxu0 0.0
    %1154 = vmatpush.msra.mxu0 0.0
    %1155 = vmatpush.msra.mxu0 0.0
    %1156 = vmatpush.msra.mxu0 %v465
    %1157 = vmatpush.msra.mxu0 %v463
    %1158 = vmatpush.msra.mxu0 %v461
    %1159 = vmatpush.msra.mxu0 %v459
    %1160 = vmatpush.msra.mxu0 %v457
    %1161 = vmatpush.msra.mxu0 %v455
    %1162 = vmatpush.msra.mxu0 %v453
    %1163 = vmatpush.msra.mxu0 %v451
    %1164 = vmatmul.f32.gmra.mxu0 %v1146
    %v1165 = vpop.f32.mrf.mxu0
    %v1166 = vadd.f32 %v474, %v1165
    %1167 = vdwg.mxu0
    %1168 = vmatpush.msra.mxu0 0.0
    %1169 = vmatpush.msra.mxu0 0.0
    %1170 = vmatpush.msra.mxu0 0.0
    %1171 = vmatpush.msra.mxu0 0.0
    %1172 = vmatpush.msra.mxu0 0.0
    %1173 = vmatpush.msra.mxu0 0.0
    %1174 = vmatpush.msra.mxu0 0.0
    %1175 = vmatpush.msra.mxu0 0.0
    %1176 = vmatpush.msra.mxu0 %v466
    %1177 = vmatpush.msra.mxu0 %v464
    %1178 = vmatpush.msra.mxu0 %v462
    %1179 = vmatpush.msra.mxu0 %v460
    %1180 = vmatpush.msra.mxu0 %v458
    %1181 = vmatpush.msra.mxu0 %v456
    %1182 = vmatpush.msra.mxu0 %v454
    %1183 = vmatpush.msra.mxu0 %v452
    %1184 = vmatmul.f32.gmra.mxu0 %v1146
    %v1185 = vpop.f32.mrf.mxu0
    %v1186 = vadd.f32 %v475, %v1185
    %1187 = vdwg.mxu0
    %s1188 = scalar_lea.vmem [#allocation2], 8
    %v1189 = vld [vmem:[%s1188] sm:$0x3]
    %v1190 = vadd.f32 %v1189, %v1166
    %v1191 = vxor.u32 %v1190, 2147483648
    %v1192 = vmul.f32 %v1191, 1.442695
    %v1193 = vpow.pop %v1192
    %v1194 = vadd.f32 %v1193, 1.0
    %v1195 = vrcp.pop %v1194
    %v1196 = vmul.f32 %v1194, %v1195
    %v1197 = vsub.f32 1.0, %v1196
    %v1198 = vmul.f32 %v1195, %v1197
    %v1199 = vadd.f32 %v1195, %v1198
    %vm1200 = vweird.f32 %v1194
    %vm1201 = vweird.f32 %v1195
    %vm1202 = vmor %vm1200, %vm1201
    %v1203 = vsel %vm1202, %v1195, %v1199
    %v1204 = vand.u32 2147483647, %v1194
    %vm1205 = vcmp.eq.f32.partialorder %v1204, 8.507059e+37
    %v1206 = vand.u32 %v1194, 2147483648
    %v1207 = vor.u32 1.1754944e-38, %v1206
    %v1208 = vsel %vm1205, %v1207, %v1203
    %v1209 = vmul.f32 1.0, %v1208
    %1211 = vrot.lane.b32.xlu0 %v1166, 64
    %v1212 = vpop.permute.xlu0 %1211
    %v1214 = vmul.f32 %v1209, %v1212
    %1216 = vrot.lane.b32.xlu0 %v1214, 64
    %v1217 = vpop.permute.xlu0 %1216
    %v1219 = vadd.f32 %v1189, %v1217
    %v1220 = vtanh.pop %v1219
    %v1221 = vsub.f32 %v1065, %v1220
    %1223 = vrot.lane.b32.xlu0 %v1221, 96
    %v1224 = vpop.permute.xlu0 %1223
    %v1226 = vmul.f32 %v1209, %v1224
    %1228 = vrot.lane.b32.xlu0 %v1226, 32
    %v1229 = vpop.permute.xlu0 %1228
    %v1231 = vadd.f32 %v1220, %v1229
    %1233 = vrot.lane.b32.xlu0 %v1231, 64
    %v1234 = vpop.permute.xlu0 %1233
    %v1235 = vsel %vm151, %v1234, 0
    %1237 = vmatpush.msra.mxu0 0.0
    %1238 = vmatpush.msra.mxu0 0.0
    %1239 = vmatpush.msra.mxu0 0.0
    %1240 = vmatpush.msra.mxu0 0.0
    %1241 = vmatpush.msra.mxu0 0.0
    %1242 = vmatpush.msra.mxu0 0.0
    %1243 = vmatpush.msra.mxu0 0.0
    %1244 = vmatpush.msra.mxu0 0.0
    %1245 = vmatpush.msra.mxu0 0.0
    %1246 = vmatpush.msra.mxu0 0.0
    %1247 = vmatpush.msra.mxu0 0.0
    %1248 = vmatpush.msra.mxu0 0.0
    %1249 = vmatpush.msra.mxu0 %v471
    %1250 = vmatpush.msra.mxu0 %v470
    %1251 = vmatpush.msra.mxu0 %v469
    %1252 = vmatpush.msra.mxu0 %v468
    %1253 = vmatmul.f32.gmra.mxu0 %v1235
    %v1254 = vpop.f32.mrf.mxu0
    %v1255 = vadd.f32 %v566, %v1254
    %1256 = vdwg.mxu0
    %1258 = vrot.lane.b32.xlu0 %v1166, 32
    %v1259 = vpop.permute.xlu0 %1258
    %1260 = vrot.lane.b32.xlu0 %v1186, 32
    %v1261 = vpop.permute.xlu0 %1260
    %v1262 = vsel %vm151, %v1259, %v1261
    %v1264 = vadd.f32 %v1255, %v1262
    %v1265 = vxor.u32 %v1264, 2147483648
    %v1266 = vmul.f32 %v1265, 1.442695
    %v1267 = vpow.pop %v1266
    %v1268 = vadd.f32 %v1267, 1.0
    %v1269 = vrcp.pop %v1268
    %v1270 = vmul.f32 %v1268, %v1269
    %v1271 = vsub.f32 1.0, %v1270
    %v1272 = vmul.f32 %v1269, %v1271
    %v1273 = vadd.f32 %v1269, %v1272
    %vm1274 = vweird.f32 %v1268
    %vm1275 = vweird.f32 %v1269
    %vm1276 = vmor %vm1274, %vm1275
    %v1277 = vsel %vm1276, %v1269, %v1273
    %v1278 = vand.u32 2147483647, %v1268
    %vm1279 = vcmp.eq.f32.partialorder %v1278, 8.507059e+37
    %v1280 = vand.u32 %v1268, 2147483648
    %v1281 = vor.u32 1.1754944e-38, %v1280
    %v1282 = vsel %vm1279, %v1281, %v1277
    %v1283 = vmul.f32 1.0, %v1282
    %1284 = vrot.lane.b32.xlu0 %v1186, 96
    %v1285 = vpop.permute.xlu0 %1284
    %v1287 = vmul.f32 %v1283, %v1285
    %1289 = vrot.lane.b32.xlu0 %v1287, 64
    %v1290 = vpop.permute.xlu0 %1289
    %v1292 = vadd.f32 %v1255, %v1290
    %v1293 = vtanh.pop %v1292
    %v1294 = vsub.f32 %v1138, %v1293
    %1296 = vrot.lane.b32.xlu0 %v1294, 96
    %v1297 = vpop.permute.xlu0 %1296
    %v1299 = vmul.f32 %v1283, %v1297
    %1301 = vrot.lane.b32.xlu0 %v1299, 32
    %v1302 = vpop.permute.xlu0 %1301
    %v1304 = vadd.f32 %v1293, %v1302
    %1307 = vrot.lane.b32.xlu0 %v1304, 96
    %v1308 = vpop.permute.xlu0 %1307
    %v1310 = vsel %vm151, %v1234, %v1308
    %v1312 = vsel %vm478, %v1310, 0
    %1314 = vmatpush.msra.mxu0 0.0
    %1315 = vmatpush.msra.mxu0 0.0
    %1316 = vmatpush.msra.mxu0 0.0
    %1317 = vmatpush.msra.mxu0 0.0
    %1318 = vmatpush.msra.mxu0 0.0
    %1319 = vmatpush.msra.mxu0 0.0
    %1320 = vmatpush.msra.mxu0 0.0
    %1321 = vmatpush.msra.mxu0 0.0
    %1322 = vmatpush.msra.mxu0 %v465
    %1323 = vmatpush.msra.mxu0 %v463
    %1324 = vmatpush.msra.mxu0 %v461
    %1325 = vmatpush.msra.mxu0 %v459
    %1326 = vmatpush.msra.mxu0 %v457
    %1327 = vmatpush.msra.mxu0 %v455
    %1328 = vmatpush.msra.mxu0 %v453
    %1329 = vmatpush.msra.mxu0 %v451
    %1330 = vmatmul.f32.gmra.mxu0 %v1312
    %v1331 = vpop.f32.mrf.mxu0
    %v1332 = vadd.f32 %v474, %v1331
    %1333 = vdwg.mxu0
    %1334 = vmatpush.msra.mxu0 0.0
    %1335 = vmatpush.msra.mxu0 0.0
    %1336 = vmatpush.msra.mxu0 0.0
    %1337 = vmatpush.msra.mxu0 0.0
    %1338 = vmatpush.msra.mxu0 0.0
    %1339 = vmatpush.msra.mxu0 0.0
    %1340 = vmatpush.msra.mxu0 0.0
    %1341 = vmatpush.msra.mxu0 0.0
    %1342 = vmatpush.msra.mxu0 %v466
    %1343 = vmatpush.msra.mxu0 %v464
    %1344 = vmatpush.msra.mxu0 %v462
    %1345 = vmatpush.msra.mxu0 %v460
    %1346 = vmatpush.msra.mxu0 %v458
    %1347 = vmatpush.msra.mxu0 %v456
    %1348 = vmatpush.msra.mxu0 %v454
    %1349 = vmatpush.msra.mxu0 %v452
    %1350 = vmatmul.f32.gmra.mxu0 %v1312
    %v1351 = vpop.f32.mrf.mxu0
    %v1352 = vadd.f32 %v475, %v1351
    %1353 = vdwg.mxu0
    %s1354 = scalar_lea.vmem [#allocation2], 10
    %v1355 = vld [vmem:[%s1354] sm:$0x3]
    %v1356 = vadd.f32 %v1355, %v1332
    %v1357 = vxor.u32 %v1356, 2147483648
    %v1358 = vmul.f32 %v1357, 1.442695
    %v1359 = vpow.pop %v1358
    %v1360 = vadd.f32 %v1359, 1.0
    %v1361 = vrcp.pop %v1360
    %v1362 = vmul.f32 %v1360, %v1361
    %v1363 = vsub.f32 1.0, %v1362
    %v1364 = vmul.f32 %v1361, %v1363
    %v1365 = vadd.f32 %v1361, %v1364
    %vm1366 = vweird.f32 %v1360
    %vm1367 = vweird.f32 %v1361
    %vm1368 = vmor %vm1366, %vm1367
    %v1369 = vsel %vm1368, %v1361, %v1365
    %v1370 = vand.u32 2147483647, %v1360
    %vm1371 = vcmp.eq.f32.partialorder %v1370, 8.507059e+37
    %v1372 = vand.u32 %v1360, 2147483648
    %v1373 = vor.u32 1.1754944e-38, %v1372
    %v1374 = vsel %vm1371, %v1373, %v1369
    %v1375 = vmul.f32 1.0, %v1374
    %1377 = vrot.lane.b32.xlu0 %v1332, 64
    %v1378 = vpop.permute.xlu0 %1377
    %v1380 = vmul.f32 %v1375, %v1378
    %1382 = vrot.lane.b32.xlu0 %v1380, 64
    %v1383 = vpop.permute.xlu0 %1382
    %v1385 = vadd.f32 %v1355, %v1383
    %v1386 = vtanh.pop %v1385
    %v1387 = vsub.f32 %v1231, %v1386
    %1389 = vrot.lane.b32.xlu0 %v1387, 96
    %v1390 = vpop.permute.xlu0 %1389
    %v1392 = vmul.f32 %v1375, %v1390
    %1394 = vrot.lane.b32.xlu0 %v1392, 32
    %v1395 = vpop.permute.xlu0 %1394
    %v1397 = vadd.f32 %v1386, %v1395
    %1399 = vrot.lane.b32.xlu0 %v1397, 64
    %v1400 = vpop.permute.xlu0 %1399
    %v1401 = vsel %vm151, %v1400, 0
    %1403 = vmatpush.msra.mxu0 0.0
    %1404 = vmatpush.msra.mxu0 0.0
    %1405 = vmatpush.msra.mxu0 0.0
    %1406 = vmatpush.msra.mxu0 0.0
    %1407 = vmatpush.msra.mxu0 0.0
    %1408 = vmatpush.msra.mxu0 0.0
    %1409 = vmatpush.msra.mxu0 0.0
    %1410 = vmatpush.msra.mxu0 0.0
    %1411 = vmatpush.msra.mxu0 0.0
    %1412 = vmatpush.msra.mxu0 0.0
    %1413 = vmatpush.msra.mxu0 0.0
    %1414 = vmatpush.msra.mxu0 0.0
    %1415 = vmatpush.msra.mxu0 %v471
    %1416 = vmatpush.msra.mxu0 %v470
    %1417 = vmatpush.msra.mxu0 %v469
    %1418 = vmatpush.msra.mxu0 %v468
    %1419 = vmatmul.f32.gmra.mxu0 %v1401
    %v1420 = vpop.f32.mrf.mxu0
    %v1421 = vadd.f32 %v566, %v1420
    %1422 = vdwg.mxu0
    %1424 = vrot.lane.b32.xlu0 %v1332, 32
    %v1425 = vpop.permute.xlu0 %1424
    %1426 = vrot.lane.b32.xlu0 %v1352, 32
    %v1427 = vpop.permute.xlu0 %1426
    %v1428 = vsel %vm151, %v1425, %v1427
    %v1430 = vadd.f32 %v1421, %v1428
    %v1431 = vxor.u32 %v1430, 2147483648
    %v1432 = vmul.f32 %v1431, 1.442695
    %v1433 = vpow.pop %v1432
    %v1434 = vadd.f32 %v1433, 1.0
    %v1435 = vrcp.pop %v1434
    %v1436 = vmul.f32 %v1434, %v1435
    %v1437 = vsub.f32 1.0, %v1436
    %v1438 = vmul.f32 %v1435, %v1437
    %v1439 = vadd.f32 %v1435, %v1438
    %vm1440 = vweird.f32 %v1434
    %vm1441 = vweird.f32 %v1435
    %vm1442 = vmor %vm1440, %vm1441
    %v1443 = vsel %vm1442, %v1435, %v1439
    %v1444 = vand.u32 2147483647, %v1434
    %vm1445 = vcmp.eq.f32.partialorder %v1444, 8.507059e+37
    %v1446 = vand.u32 %v1434, 2147483648
    %v1447 = vor.u32 1.1754944e-38, %v1446
    %v1448 = vsel %vm1445, %v1447, %v1443
    %v1449 = vmul.f32 1.0, %v1448
    %1450 = vrot.lane.b32.xlu0 %v1352, 96
    %v1451 = vpop.permute.xlu0 %1450
    %v1453 = vmul.f32 %v1449, %v1451
    %1455 = vrot.lane.b32.xlu0 %v1453, 64
    %v1456 = vpop.permute.xlu0 %1455
    %v1458 = vadd.f32 %v1421, %v1456
    %v1459 = vtanh.pop %v1458
    %v1460 = vsub.f32 %v1304, %v1459
    %1462 = vrot.lane.b32.xlu0 %v1460, 96
    %v1463 = vpop.permute.xlu0 %1462
    %v1465 = vmul.f32 %v1449, %v1463
    %1467 = vrot.lane.b32.xlu0 %v1465, 32
    %v1468 = vpop.permute.xlu0 %1467
    %v1470 = vadd.f32 %v1459, %v1468
    %1473 = vrot.lane.b32.xlu0 %v1470, 96
    %v1474 = vpop.permute.xlu0 %1473
    %v1476 = vsel %vm151, %v1400, %v1474
    %v1478 = vsel %vm478, %v1476, 0
    %1480 = vmatpush.msra.mxu0 0.0
    %1481 = vmatpush.msra.mxu0 0.0
    %1482 = vmatpush.msra.mxu0 0.0
    %1483 = vmatpush.msra.mxu0 0.0
    %1484 = vmatpush.msra.mxu0 0.0
    %1485 = vmatpush.msra.mxu0 0.0
    %1486 = vmatpush.msra.mxu0 0.0
    %1487 = vmatpush.msra.mxu0 0.0
    %1488 = vmatpush.msra.mxu0 %v465
    %1489 = vmatpush.msra.mxu0 %v463
    %1490 = vmatpush.msra.mxu0 %v461
    %1491 = vmatpush.msra.mxu0 %v459
    %1492 = vmatpush.msra.mxu0 %v457
    %1493 = vmatpush.msra.mxu0 %v455
    %1494 = vmatpush.msra.mxu0 %v453
    %1495 = vmatpush.msra.mxu0 %v451
    %1496 = vmatmul.f32.gmra.mxu0 %v1478
    %v1497 = vpop.f32.mrf.mxu0
    %v1498 = vadd.f32 %v474, %v1497
    %1499 = vdwg.mxu0
    %1500 = vmatpush.msra.mxu0 0.0
    %1501 = vmatpush.msra.mxu0 0.0
    %1502 = vmatpush.msra.mxu0 0.0
    %1503 = vmatpush.msra.mxu0 0.0
    %1504 = vmatpush.msra.mxu0 0.0
    %1505 = vmatpush.msra.mxu0 0.0
    %1506 = vmatpush.msra.mxu0 0.0
    %1507 = vmatpush.msra.mxu0 0.0
    %1508 = vmatpush.msra.mxu0 %v466
    %1509 = vmatpush.msra.mxu0 %v464
    %1510 = vmatpush.msra.mxu0 %v462
    %1511 = vmatpush.msra.mxu0 %v460
    %1512 = vmatpush.msra.mxu0 %v458
    %1513 = vmatpush.msra.mxu0 %v456
    %1514 = vmatpush.msra.mxu0 %v454
    %1515 = vmatpush.msra.mxu0 %v452
    %1516 = vmatmul.f32.gmra.mxu0 %v1478
    %v1517 = vpop.f32.mrf.mxu0
    %v1518 = vadd.f32 %v475, %v1517
    %1519 = vdwg.mxu0
    %s1520 = scalar_lea.vmem [#allocation2], 12
    %v1521 = vld [vmem:[%s1520] sm:$0x3]
    %v1522 = vadd.f32 %v1521, %v1498
    %v1523 = vxor.u32 %v1522, 2147483648
    %v1524 = vmul.f32 %v1523, 1.442695
    %v1525 = vpow.pop %v1524
    %v1526 = vadd.f32 %v1525, 1.0
    %v1527 = vrcp.pop %v1526
    %v1528 = vmul.f32 %v1526, %v1527
    %v1529 = vsub.f32 1.0, %v1528
    %v1530 = vmul.f32 %v1527, %v1529
    %v1531 = vadd.f32 %v1527, %v1530
    %vm1532 = vweird.f32 %v1526
    %vm1533 = vweird.f32 %v1527
    %vm1534 = vmor %vm1532, %vm1533
    %v1535 = vsel %vm1534, %v1527, %v1531
    %v1536 = vand.u32 2147483647, %v1526
    %vm1537 = vcmp.eq.f32.partialorder %v1536, 8.507059e+37
    %v1538 = vand.u32 %v1526, 2147483648
    %v1539 = vor.u32 1.1754944e-38, %v1538
    %v1540 = vsel %vm1537, %v1539, %v1535
    %v1541 = vmul.f32 1.0, %v1540
    %1543 = vrot.lane.b32.xlu0 %v1498, 64
    %v1544 = vpop.permute.xlu0 %1543
    %v1546 = vmul.f32 %v1541, %v1544
    %1548 = vrot.lane.b32.xlu0 %v1546, 64
    %v1549 = vpop.permute.xlu0 %1548
    %v1551 = vadd.f32 %v1521, %v1549
    %v1552 = vtanh.pop %v1551
    %v1553 = vsub.f32 %v1397, %v1552
    %1555 = vrot.lane.b32.xlu0 %v1553, 96
    %v1556 = vpop.permute.xlu0 %1555
    %v1558 = vmul.f32 %v1541, %v1556
    %1560 = vrot.lane.b32.xlu0 %v1558, 32
    %v1561 = vpop.permute.xlu0 %1560
    %v1563 = vadd.f32 %v1552, %v1561
    %1565 = vrot.lane.b32.xlu0 %v1563, 64
    %v1566 = vpop.permute.xlu0 %1565
    %v1567 = vsel %vm151, %v1566, 0
    %1569 = vmatpush.msra.mxu0 0.0
    %1570 = vmatpush.msra.mxu0 0.0
    %1571 = vmatpush.msra.mxu0 0.0
    %1572 = vmatpush.msra.mxu0 0.0
    %1573 = vmatpush.msra.mxu0 0.0
    %1574 = vmatpush.msra.mxu0 0.0
    %1575 = vmatpush.msra.mxu0 0.0
    %1576 = vmatpush.msra.mxu0 0.0
    %1577 = vmatpush.msra.mxu0 0.0
    %1578 = vmatpush.msra.mxu0 0.0
    %1579 = vmatpush.msra.mxu0 0.0
    %1580 = vmatpush.msra.mxu0 0.0
    %1581 = vmatpush.msra.mxu0 %v471
    %1582 = vmatpush.msra.mxu0 %v470
    %1583 = vmatpush.msra.mxu0 %v469
    %1584 = vmatpush.msra.mxu0 %v468
    %1585 = vmatmul.f32.gmra.mxu0 %v1567
    %v1586 = vpop.f32.mrf.mxu0
    %v1587 = vadd.f32 %v566, %v1586
    %1588 = vdwg.mxu0
    %1590 = vrot.lane.b32.xlu0 %v1498, 32
    %v1591 = vpop.permute.xlu0 %1590
    %1592 = vrot.lane.b32.xlu0 %v1518, 32
    %v1593 = vpop.permute.xlu0 %1592
    %v1594 = vsel %vm151, %v1591, %v1593
    %v1596 = vadd.f32 %v1587, %v1594
    %v1597 = vxor.u32 %v1596, 2147483648
    %v1598 = vmul.f32 %v1597, 1.442695
    %v1599 = vpow.pop %v1598
    %v1600 = vadd.f32 %v1599, 1.0
    %v1601 = vrcp.pop %v1600
    %v1602 = vmul.f32 %v1600, %v1601
    %v1603 = vsub.f32 1.0, %v1602
    %v1604 = vmul.f32 %v1601, %v1603
    %v1605 = vadd.f32 %v1601, %v1604
    %vm1606 = vweird.f32 %v1600
    %vm1607 = vweird.f32 %v1601
    %vm1608 = vmor %vm1606, %vm1607
    %v1609 = vsel %vm1608, %v1601, %v1605
    %v1610 = vand.u32 2147483647, %v1600
    %vm1611 = vcmp.eq.f32.partialorder %v1610, 8.507059e+37
    %v1612 = vand.u32 %v1600, 2147483648
    %v1613 = vor.u32 1.1754944e-38, %v1612
    %v1614 = vsel %vm1611, %v1613, %v1609
    %v1615 = vmul.f32 1.0, %v1614
    %1616 = vrot.lane.b32.xlu0 %v1518, 96
    %v1617 = vpop.permute.xlu0 %1616
    %v1619 = vmul.f32 %v1615, %v1617
    %1621 = vrot.lane.b32.xlu0 %v1619, 64
    %v1622 = vpop.permute.xlu0 %1621
    %v1624 = vadd.f32 %v1587, %v1622
    %v1625 = vtanh.pop %v1624
    %v1626 = vsub.f32 %v1470, %v1625
    %1628 = vrot.lane.b32.xlu0 %v1626, 96
    %v1629 = vpop.permute.xlu0 %1628
    %v1631 = vmul.f32 %v1615, %v1629
    %1633 = vrot.lane.b32.xlu0 %v1631, 32
    %v1634 = vpop.permute.xlu0 %1633
    %v1636 = vadd.f32 %v1625, %v1634
    %1639 = vrot.lane.b32.xlu0 %v1636, 96
    %v1640 = vpop.permute.xlu0 %1639
    %v1642 = vsel %vm151, %v1566, %v1640
    %v1644 = vsel %vm478, %v1642, 0
    %1646 = vmatpush.msra.mxu0 0.0
    %1647 = vmatpush.msra.mxu0 0.0
    %1648 = vmatpush.msra.mxu0 0.0
    %1649 = vmatpush.msra.mxu0 0.0
    %1650 = vmatpush.msra.mxu0 0.0
    %1651 = vmatpush.msra.mxu0 0.0
    %1652 = vmatpush.msra.mxu0 0.0
    %1653 = vmatpush.msra.mxu0 0.0
    %1654 = vmatpush.msra.mxu0 %v465
    %1655 = vmatpush.msra.mxu0 %v463
    %1656 = vmatpush.msra.mxu0 %v461
    %1657 = vmatpush.msra.mxu0 %v459
    %1658 = vmatpush.msra.mxu0 %v457
    %1659 = vmatpush.msra.mxu0 %v455
    %1660 = vmatpush.msra.mxu0 %v453
    %1661 = vmatpush.msra.mxu0 %v451
    %1662 = vmatmul.f32.gmra.mxu0 %v1644
    %v1663 = vpop.f32.mrf.mxu0
    %v1664 = vadd.f32 %v474, %v1663
    %1665 = vdwg.mxu0
    %1666 = vmatpush.msra.mxu0 0.0
    %1667 = vmatpush.msra.mxu0 0.0
    %1668 = vmatpush.msra.mxu0 0.0
    %1669 = vmatpush.msra.mxu0 0.0
    %1670 = vmatpush.msra.mxu0 0.0
    %1671 = vmatpush.msra.mxu0 0.0
    %1672 = vmatpush.msra.mxu0 0.0
    %1673 = vmatpush.msra.mxu0 0.0
    %1674 = vmatpush.msra.mxu0 %v466
    %1675 = vmatpush.msra.mxu0 %v464
    %1676 = vmatpush.msra.mxu0 %v462
    %1677 = vmatpush.msra.mxu0 %v460
    %1678 = vmatpush.msra.mxu0 %v458
    %1679 = vmatpush.msra.mxu0 %v456
    %1680 = vmatpush.msra.mxu0 %v454
    %1681 = vmatpush.msra.mxu0 %v452
    %1682 = vmatmul.f32.gmra.mxu0 %v1644
    %v1683 = vpop.f32.mrf.mxu0
    %v1684 = vadd.f32 %v475, %v1683
    %1685 = vdwg.mxu0
    %s1686 = scalar_lea.vmem [#allocation2], 14
    %v1687 = vld [vmem:[%s1686] sm:$0x3]
    %v1688 = vadd.f32 %v1687, %v1664
    %v1689 = vxor.u32 %v1688, 2147483648
    %v1690 = vmul.f32 %v1689, 1.442695
    %v1691 = vpow.pop %v1690
    %v1692 = vadd.f32 %v1691, 1.0
    %v1693 = vrcp.pop %v1692
    %v1694 = vmul.f32 %v1692, %v1693
    %v1695 = vsub.f32 1.0, %v1694
    %v1696 = vmul.f32 %v1693, %v1695
    %v1697 = vadd.f32 %v1693, %v1696
    %vm1698 = vweird.f32 %v1692
    %vm1699 = vweird.f32 %v1693
    %vm1700 = vmor %vm1698, %vm1699
    %v1701 = vsel %vm1700, %v1693, %v1697
    %v1702 = vand.u32 2147483647, %v1692
    %vm1703 = vcmp.eq.f32.partialorder %v1702, 8.507059e+37
    %v1704 = vand.u32 %v1692, 2147483648
    %v1705 = vor.u32 1.1754944e-38, %v1704
    %v1706 = vsel %vm1703, %v1705, %v1701
    %v1707 = vmul.f32 1.0, %v1706
    %1709 = vrot.lane.b32.xlu0 %v1664, 64
    %v1710 = vpop.permute.xlu0 %1709
    %v1712 = vmul.f32 %v1707, %v1710
    %1714 = vrot.lane.b32.xlu0 %v1712, 64
    %v1715 = vpop.permute.xlu0 %1714
    %v1717 = vadd.f32 %v1687, %v1715
    %v1718 = vtanh.pop %v1717
    %v1719 = vsub.f32 %v1563, %v1718
    %1721 = vrot.lane.b32.xlu0 %v1719, 96
    %v1722 = vpop.permute.xlu0 %1721
    %v1724 = vmul.f32 %v1707, %v1722
    %1726 = vrot.lane.b32.xlu0 %v1724, 32
    %v1727 = vpop.permute.xlu0 %1726
    %v1729 = vadd.f32 %v1718, %v1727
    %1731 = vrot.lane.b32.xlu0 %v1729, 64
    %v1732 = vpop.permute.xlu0 %1731
    %v1733 = vsel %vm151, %v1732, 0
    %1735 = vmatpush.msra.mxu0 0.0
    %1736 = vmatpush.msra.mxu0 0.0
    %1737 = vmatpush.msra.mxu0 0.0
    %1738 = vmatpush.msra.mxu0 0.0
    %1739 = vmatpush.msra.mxu0 0.0
    %1740 = vmatpush.msra.mxu0 0.0
    %1741 = vmatpush.msra.mxu0 0.0
    %1742 = vmatpush.msra.mxu0 0.0
    %1743 = vmatpush.msra.mxu0 0.0
    %1744 = vmatpush.msra.mxu0 0.0
    %1745 = vmatpush.msra.mxu0 0.0
    %1746 = vmatpush.msra.mxu0 0.0
    %1747 = vmatpush.msra.mxu0 %v471
    %1748 = vmatpush.msra.mxu0 %v470
    %1749 = vmatpush.msra.mxu0 %v469
    %1750 = vmatpush.msra.mxu0 %v468
    %1751 = vmatmul.f32.gmra.mxu0 %v1733
    %v1752 = vpop.f32.mrf.mxu0
    %v1753 = vadd.f32 %v566, %v1752
    %1754 = vdwg.mxu0
    %1756 = vrot.lane.b32.xlu0 %v1664, 32
    %v1757 = vpop.permute.xlu0 %1756
    %1758 = vrot.lane.b32.xlu0 %v1684, 32
    %v1759 = vpop.permute.xlu0 %1758
    %v1760 = vsel %vm151, %v1757, %v1759
    %v1762 = vadd.f32 %v1753, %v1760
    %v1763 = vxor.u32 %v1762, 2147483648
    %v1764 = vmul.f32 %v1763, 1.442695
    %v1765 = vpow.pop %v1764
    %v1766 = vadd.f32 %v1765, 1.0
    %v1767 = vrcp.pop %v1766
    %v1768 = vmul.f32 %v1766, %v1767
    %v1769 = vsub.f32 1.0, %v1768
    %v1770 = vmul.f32 %v1767, %v1769
    %v1771 = vadd.f32 %v1767, %v1770
    %vm1772 = vweird.f32 %v1766
    %vm1773 = vweird.f32 %v1767
    %vm1774 = vmor %vm1772, %vm1773
    %v1775 = vsel %vm1774, %v1767, %v1771
    %v1776 = vand.u32 2147483647, %v1766
    %vm1777 = vcmp.eq.f32.partialorder %v1776, 8.507059e+37
    %v1778 = vand.u32 %v1766, 2147483648
    %v1779 = vor.u32 1.1754944e-38, %v1778
    %v1780 = vsel %vm1777, %v1779, %v1775
    %v1781 = vmul.f32 1.0, %v1780
    %1782 = vrot.lane.b32.xlu0 %v1684, 96
    %v1783 = vpop.permute.xlu0 %1782
    %v1785 = vmul.f32 %v1781, %v1783
    %1787 = vrot.lane.b32.xlu0 %v1785, 64
    %v1788 = vpop.permute.xlu0 %1787
    %v1790 = vadd.f32 %v1753, %v1788
    %v1791 = vtanh.pop %v1790
    %v1792 = vsub.f32 %v1636, %v1791
    %1794 = vrot.lane.b32.xlu0 %v1792, 96
    %v1795 = vpop.permute.xlu0 %1794
    %v1797 = vmul.f32 %v1781, %v1795
    %1799 = vrot.lane.b32.xlu0 %v1797, 32
    %v1800 = vpop.permute.xlu0 %1799
    %v1802 = vadd.f32 %v1791, %v1800
    %v1803 = vld [vmem:[%s9] sm:$0x1]
    %v1805 = vperm.slane %v1803, 0
    %1806 = vrot.lane.b32.xlu0 %v1805, 64
    %v1807 = vpop.permute.xlu0 %1806
    %v1809 = vmul.f32 %v1802, %v1807
    %1811 = vrot.lane.b32.xlu0 %v1809, 64
    %v1812 = vpop.permute.xlu0 %1811
    %vm1814 = vcmask 254976
    %v1815 = vsel %vm1814, %v1812, 0.0
    %1816 = vadd.xlane.f32.xlu0 %v1815
    %v1817 = vpop.xlane.xlu0 %1816
    %v1818 = vld [vmem:[#allocation3] sm:$0x1]
    %v1820 = vperm.slane %v1818, 0
    %v1822 = vadd.f32 %v1817, %v1820
    %v1823 = vxor.u32 %v1822, 2147483648
    %v1824 = vmul.f32 %v1823, 1.442695
    %v1825 = vpow.pop %v1824
    %v1826 = vadd.f32 %v1825, 1.0
    %v1827 = vrcp.pop %v1826
    %v1828 = vmul.f32 %v1826, %v1827
    %v1829 = vsub.f32 1.0, %v1828
    %v1830 = vmul.f32 %v1827, %v1829
    %v1831 = vadd.f32 %v1827, %v1830
    %vm1832 = vweird.f32 %v1826
    %vm1833 = vweird.f32 %v1827
    %vm1834 = vmor %vm1832, %vm1833
    %v1835 = vsel %vm1834, %v1827, %v1831
    %v1836 = vand.u32 2147483647, %v1826
    %vm1837 = vcmp.eq.f32.partialorder %v1836, 8.507059e+37
    %v1838 = vand.u32 %v1826, 2147483648
    %v1839 = vor.u32 1.1754944e-38, %v1838
    %v1840 = vsel %vm1837, %v1839, %v1835
    %v1841 = vmul.f32 1.0, %v1840
    %vm1842 = vcmask 1024
    %1843 = vst.msk [vmem:[%s11] sm:$0x3] %vm1842, %v1841
    // Predicated region
    $region66: #{tpu_custom_call.1} parent=1 // pred_check
      _
    $region67: #{tpu_custom_call.1} parent=1 // pred_check_branch
      %1845 = sbr.rel (0) target = $region69
    $region68: #{tpu_custom_call.1} parent=1 // pred_region
      _
    $region69: #{tpu_custom_call.1} parent=1 // pred_fallthru
      _
    // Predicated region
    $region70: #{tpu_custom_call.1} parent=1 // pred_check
      _
    $region71: #{tpu_custom_call.1} parent=1 // pred_check_branch
      %1847 = sbr.rel (0) target = $region73
    $region72: #{tpu_custom_call.1} parent=1 // pred_region
      _
    $region73: #{tpu_custom_call.1} parent=1 // pred_fallthru
      _
    %1848 = vsyncpa [#allocation5], 1
    %1849 = vsyncpa [#allocation7], 1
    %1850 = vsyncpa [#allocation10], 1

</llo_original>
